<compile_context>
chip_gen: v7x
topology: tpu7x:2x2x1
jax: 0.10.0
libtpu: 0.0.40
codegen_flags: <defaults>
</compile_context>

<pallas_src>
import jax
import jax.numpy as jnp
from jax.experimental import pallas as pl
from jax.experimental.pallas import tpu as pltpu

IN_DIM = 3 * 32 * 32   # cifar10 input, flattened (matches torch x.view(b, c*h*w))
WIDTH = 128            # args.width
NUM_CLASSES = 10
OUT_PAD = 128          # lane-dense padded logits width
MAX_TILE_B = 512       # 512*3072*2B = 3 MiB / block -> 6 MiB double-buffered


def _round_up(x, m):
    return ((x + m - 1) // m) * m


def _mlp_kernel(x_ref, w1_ref, b1_ref, w2_ref, b2_ref, w3_ref, b3_ref, o_ref):
    # fc1 + bias + ReLU  (bf16 MXU, f32 accumulate)
    h1 = jnp.dot(x_ref[...], w1_ref[...], preferred_element_type=jnp.float32)
    h1 = jnp.maximum(h1 + b1_ref[...], 0.0)
    # fc2 + bias + ReLU
    h2 = jnp.dot(h1.astype(w2_ref.dtype), w2_ref[...],
                 preferred_element_type=jnp.float32)
    h2 = jnp.maximum(h2 + b2_ref[...], 0.0)
    # fc3 (padded to 128 lanes, no activation)
    out = jnp.dot(h2.astype(w3_ref.dtype), w3_ref[...],
                  preferred_element_type=jnp.float32)
    o_ref[...] = (out + b3_ref[...]).astype(o_ref.dtype)


def mlp_forward(x_nchw, params):
    """x_nchw: [B, C, H, W] float32. params: dict of f32 weights/biases."""
    b = x_nchw.shape[0]
    # torch: x.view(b, c*h*w); jnp.reshape on the contiguous NCHW layout matches.
    x_flat = x_nchw.reshape(b, -1).astype(jnp.bfloat16)

    # Batch tile: multiple of 8 sublanes, capped at MAX_TILE_B; pad B up to it.
    tile_b = min(MAX_TILE_B, _round_up(b, 8))
    b_pad = _round_up(b, tile_b)
    if b_pad != b:
        x_flat = jnp.pad(x_flat, ((0, b_pad - b), (0, 0)))

    # bf16 weights; f32 biases. Pad fc3 to a lane-dense [128,128] / [1,128].
    w1 = params["w1"].astype(jnp.bfloat16)
    w2 = params["w2"].astype(jnp.bfloat16)
    w3 = jnp.pad(params["w3"],
                 ((0, 0), (0, OUT_PAD - NUM_CLASSES))).astype(jnp.bfloat16)
    b1 = params["b1"].astype(jnp.float32)
    b2 = params["b2"].astype(jnp.float32)
    b3 = jnp.pad(params["b3"],
                 ((0, 0), (0, OUT_PAD - NUM_CLASSES))).astype(jnp.float32)

    grid = (b_pad // tile_b,)

    out = pl.pallas_call(
        _mlp_kernel,
        out_shape=jax.ShapeDtypeStruct((b_pad, OUT_PAD), jnp.float32),
        grid=grid,
        in_specs=[
            pl.BlockSpec((tile_b, IN_DIM), lambda i: (i, 0)),    # x (streamed)
            pl.BlockSpec((IN_DIM, WIDTH),  lambda i: (0, 0)),    # w1 (resident)
            pl.BlockSpec((1, WIDTH),       lambda i: (0, 0)),    # b1
            pl.BlockSpec((WIDTH, WIDTH),   lambda i: (0, 0)),    # w2
            pl.BlockSpec((1, WIDTH),       lambda i: (0, 0)),    # b2
            pl.BlockSpec((WIDTH, OUT_PAD), lambda i: (0, 0)),    # w3 (padded)
            pl.BlockSpec((1, OUT_PAD),     lambda i: (0, 0)),    # b3 (padded)
        ],
        out_specs=pl.BlockSpec((tile_b, OUT_PAD), lambda i: (i, 0)),
        compiler_params=pltpu.CompilerParams(
            dimension_semantics=("parallel",),
            vmem_limit_bytes=64 * 1024 * 1024,
        ),
    )(x_flat, w1, b1, w2, b2, w3, b3)

    # Drop batch padding and the padded logit lanes.
    return out[:b, :NUM_CLASSES]


def init_params(key):
    """Deterministic init matching PyTorch Linear shapes.
    PyTorch stores weight as (out, in) and computes x @ W.T + b; we store the
    transposed (in, out) layout so the kernel does x @ W + b directly."""
    def linear(k, fan_in, fan_out):
        kw, kb = jax.random.split(k)
        bound = 1.0 / (fan_in ** 0.5)
        w = jax.random.uniform(kw, (fan_in, fan_out), jnp.float32, -bound, bound)
        b = jax.random.uniform(kb, (1, fan_out), jnp.float32, -bound, bound)
        return w, b

    k1, k2, k3 = jax.random.split(key, 3)
    w1, b1 = linear(k1, IN_DIM, WIDTH)
    w2, b2 = linear(k2, WIDTH, WIDTH)
    w3, b3 = linear(k3, WIDTH, NUM_CLASSES)
    return {"w1": w1, "b1": b1, "w2": w2, "b2": b2, "w3": w3, "b3": b3}


def reference_forward(x_nchw, p):
    x = x_nchw.reshape(x_nchw.shape[0], -1)
    h1 = jnp.maximum(x @ p["w1"] + p["b1"], 0.0)
    h2 = jnp.maximum(h1 @ p["w2"] + p["b2"], 0.0)
    return h2 @ p["w3"] + p["b3"]


if __name__ == "__main__":
    key = jax.random.PRNGKey(0)
    kx, kp = jax.random.split(key)

    # cifar10-shaped input at small batch
    x = jax.random.normal(kx, (2, 3, 32, 32), jnp.float32)
    params = init_params(kp)

    out = mlp_forward(x, params)
    out = jax.block_until_ready(out)

    ref = reference_forward(x, params)
    assert out.shape == (2, NUM_CLASSES), out.shape
    # bf16 data path (f32 accumulation) vs f32 reference -> loosened tolerance.
    max_err = float(jnp.max(jnp.abs(out - ref)))
    assert jnp.allclose(out, ref, atol=5e-2, rtol=5e-2), max_err

    print("KERNEL_OK")
</pallas_src>

<mosaic_0001>
module attributes {stable_mosaic.version = 11 : i64} {
  func.func @_mlp_kernel(%arg0: i32, %arg1: memref<8x3072xbf16, #tpu.memory_space<vmem>>, %arg2: memref<3072x128xbf16, #tpu.memory_space<vmem>>, %arg3: memref<1x128xf32, #tpu.memory_space<vmem>>, %arg4: memref<128x128xbf16, #tpu.memory_space<vmem>>, %arg5: memref<1x128xf32, #tpu.memory_space<vmem>>, %arg6: memref<128x128xbf16, #tpu.memory_space<vmem>>, %arg7: memref<1x128xf32, #tpu.memory_space<vmem>>, %arg8: memref<8x128xf32, #tpu.memory_space<vmem>>) attributes {dimension_semantics = [#tpu.dimension_semantics<parallel>], iteration_bounds = array<i64: 1>, scalar_prefetch = 0 : i64, scratch_operands = 0 : i64, tpu.core_type = #tpu.core_type<tc>, window_params = [{transform_indices = @transform_0, window_bounds = array<i64: 8, 3072>}, {pipeline_mode = #tpu.pipeline_mode<synchronous>, transform_indices = @transform_1, window_bounds = array<i64: 3072, 128>}, {pipeline_mode = #tpu.pipeline_mode<synchronous>, transform_indices = @transform_2, window_bounds = array<i64: 1, 128>}, {pipeline_mode = #tpu.pipeline_mode<synchronous>, transform_indices = @transform_3, window_bounds = array<i64: 128, 128>}, {pipeline_mode = #tpu.pipeline_mode<synchronous>, transform_indices = @transform_4, window_bounds = array<i64: 1, 128>}, {pipeline_mode = #tpu.pipeline_mode<synchronous>, transform_indices = @transform_5, window_bounds = array<i64: 128, 128>}, {pipeline_mode = #tpu.pipeline_mode<synchronous>, transform_indices = @transform_6, window_bounds = array<i64: 1, 128>}, {transform_indices = @transform_7, window_bounds = array<i64: 8, 128>}]} {
    %c0 = arith.constant 0 : index
    %c0_0 = arith.constant 0 : index
    %0 = vector.load %arg1[%c0, %c0_0] : memref<8x3072xbf16, #tpu.memory_space<vmem>>, vector<8x3072xbf16>
    %c0_1 = arith.constant 0 : index
    %c0_2 = arith.constant 0 : index
    %1 = vector.load %arg2[%c0_1, %c0_2] : memref<3072x128xbf16, #tpu.memory_space<vmem>>, vector<3072x128xbf16>
    %cst = arith.constant dense<0.000000e+00> : vector<8x128xf32>
    %2 = tpu.matmul %0, %1, %cst {dimension_numbers = #tpu.dot_dimension_numbers<[1], [0], [0], [1], [0, 0, 1, 1], [], []>} : vector<8x3072xbf16>, vector<3072x128xbf16>, vector<8x128xf32> -> vector<8x128xf32>
    %c0_3 = arith.constant 0 : index
    %c0_4 = arith.constant 0 : index
    %3 = vector.load %arg3[%c0_3, %c0_4] : memref<1x128xf32, #tpu.memory_space<vmem>>, vector<1x128xf32>
    %4 = vector.broadcast %3 : vector<1x128xf32> to vector<8x128xf32>
    %5 = arith.addf %2, %4 : vector<8x128xf32>
    %cst_5 = arith.constant 0.000000e+00 : f32
    %6 = vector.broadcast %cst_5 : f32 to vector<8x128xf32>
    %7 = arith.maximumf %5, %6 : vector<8x128xf32>
    %8 = arith.truncf %7 : vector<8x128xf32> to vector<8x128xbf16>
    %c0_6 = arith.constant 0 : index
    %c0_7 = arith.constant 0 : index
    %9 = vector.load %arg4[%c0_6, %c0_7] : memref<128x128xbf16, #tpu.memory_space<vmem>>, vector<128x128xbf16>
    %cst_8 = arith.constant dense<0.000000e+00> : vector<8x128xf32>
    %10 = tpu.matmul %8, %9, %cst_8 {dimension_numbers = #tpu.dot_dimension_numbers<[1], [0], [0], [1], [0, 0, 1, 1], [], []>} : vector<8x128xbf16>, vector<128x128xbf16>, vector<8x128xf32> -> vector<8x128xf32>
    %c0_9 = arith.constant 0 : index
    %c0_10 = arith.constant 0 : index
    %11 = vector.load %arg5[%c0_9, %c0_10] : memref<1x128xf32, #tpu.memory_space<vmem>>, vector<1x128xf32>
    %12 = vector.broadcast %11 : vector<1x128xf32> to vector<8x128xf32>
    %13 = arith.addf %10, %12 : vector<8x128xf32>
    %cst_11 = arith.constant 0.000000e+00 : f32
    %14 = vector.broadcast %cst_11 : f32 to vector<8x128xf32>
    %15 = arith.maximumf %13, %14 : vector<8x128xf32>
    %16 = arith.truncf %15 : vector<8x128xf32> to vector<8x128xbf16>
    %c0_12 = arith.constant 0 : index
    %c0_13 = arith.constant 0 : index
    %17 = vector.load %arg6[%c0_12, %c0_13] : memref<128x128xbf16, #tpu.memory_space<vmem>>, vector<128x128xbf16>
    %cst_14 = arith.constant dense<0.000000e+00> : vector<8x128xf32>
    %18 = tpu.matmul %16, %17, %cst_14 {dimension_numbers = #tpu.dot_dimension_numbers<[1], [0], [0], [1], [0, 0, 1, 1], [], []>} : vector<8x128xbf16>, vector<128x128xbf16>, vector<8x128xf32> -> vector<8x128xf32>
    %c0_15 = arith.constant 0 : index
    %c0_16 = arith.constant 0 : index
    %19 = vector.load %arg7[%c0_15, %c0_16] : memref<1x128xf32, #tpu.memory_space<vmem>>, vector<1x128xf32>
    %20 = vector.broadcast %19 : vector<1x128xf32> to vector<8x128xf32>
    %21 = arith.addf %18, %20 : vector<8x128xf32>
    %c0_17 = arith.constant 0 : index
    %c0_18 = arith.constant 0 : index
    %22 = vector.load %arg8[%c0_17, %c0_18] : memref<8x128xf32, #tpu.memory_space<vmem>>, vector<8x128xf32>
    tpu.vector_store %arg8[%c0_17, %c0_18], %21 {strides = array<i32>} : memref<8x128xf32, #tpu.memory_space<vmem>>, vector<8x128xf32>,
    return
  }
  func.func @transform_0(%arg0: i32) -> (i32, i32) {
    %c0_i32 = arith.constant 0 : i32
    %c0_i32_0 = arith.constant 0 : i32
    return %arg0, %c0_i32 : i32, i32
  }
  func.func @transform_1(%arg0: i32) -> (i32, i32) {
    %c0_i32 = arith.constant 0 : i32
    %c0_i32_0 = arith.constant 0 : i32
    %c0_i32_1 = arith.constant 0 : i32
    return %c0_i32, %c0_i32_0 : i32, i32
  }
  func.func @transform_2(%arg0: i32) -> (i32, i32) {
    %c0_i32 = arith.constant 0 : i32
    %c0_i32_0 = arith.constant 0 : i32
    %c0_i32_1 = arith.constant 0 : i32
    return %c0_i32, %c0_i32_0 : i32, i32
  }
  func.func @transform_3(%arg0: i32) -> (i32, i32) {
    %c0_i32 = arith.constant 0 : i32
    %c0_i32_0 = arith.constant 0 : i32
    %c0_i32_1 = arith.constant 0 : i32
    return %c0_i32, %c0_i32_0 : i32, i32
  }
  func.func @transform_4(%arg0: i32) -> (i32, i32) {
    %c0_i32 = arith.constant 0 : i32
    %c0_i32_0 = arith.constant 0 : i32
    %c0_i32_1 = arith.constant 0 : i32
    return %c0_i32, %c0_i32_0 : i32, i32
  }
  func.func @transform_5(%arg0: i32) -> (i32, i32) {
    %c0_i32 = arith.constant 0 : i32
    %c0_i32_0 = arith.constant 0 : i32
    %c0_i32_1 = arith.constant 0 : i32
    return %c0_i32, %c0_i32_0 : i32, i32
  }
  func.func @transform_6(%arg0: i32) -> (i32, i32) {
    %c0_i32 = arith.constant 0 : i32
    %c0_i32_0 = arith.constant 0 : i32
    %c0_i32_1 = arith.constant 0 : i32
    return %c0_i32, %c0_i32_0 : i32, i32
  }
  func.func @transform_7(%arg0: i32) -> (i32, i32) {
    %c0_i32 = arith.constant 0 : i32
    %c0_i32_0 = arith.constant 0 : i32
    return %arg0, %c0_i32 : i32, i32
  }
}

</mosaic_0001>

<llo_original>
// kernel: tpu_custom_call.1
$region0: #{tpu_custom_call.1}
  #allocation0 [shape = 'u32[]', space=smem, size = 0x4, offset = 0x4, fixed_abs, tag = 'smem constant byte address 0x4 - core index']
  #allocation1 [shape = 'u32[144,128]{1,0:T(1,128)}', space=vmem, size = 0x12000, scoped, tag = 'internal scratch']
  %s0 = inlined_call_operand.hbm [shape: bf16[8,3072], index: 0, kind: input, shape index: {}]
  %s1 = inlined_call_operand.hbm [shape: bf16[3072,128], index: 1, kind: input, shape index: {}]
  %s2 = inlined_call_operand.hbm [shape: f32[1,128], index: 2, kind: input, shape index: {}]
  %s3 = inlined_call_operand.hbm [shape: bf16[128,128], index: 3, kind: input, shape index: {}]
  %s4 = inlined_call_operand.hbm [shape: f32[1,128], index: 4, kind: input, shape index: {}]
  %s5 = inlined_call_operand.hbm [shape: bf16[128,128], index: 5, kind: input, shape index: {}]
  %s6 = inlined_call_operand.hbm [shape: f32[1,128], index: 6, kind: input, shape index: {}]
  %s7 = inlined_call_operand.hbm [shape: f32[8,128], index: 7, kind: output, shape index: {}]
  %s8 = sld [smem:[#allocation0]]
  $region66: #{tpu_custom_call.1} parent=0
    _
  %s10 = ssub.s32 1, %s8
  %s11 = scalar_select 0, %s10, %s8
  $region1: #{tpu_custom_call.1} parent=0
    #allocation2 [shape = 'u8[49152]{0}', space=vmem, size = 0xc000, scoped, tag = 'input window, operand 0, single buffered']
    #allocation3 [shape = 's32[1]{0}', space=sflag, size = 0x4, scoped, tag = 'scoped memory for tpu_custom_call.1']
    #allocation4 [shape = 's32[1]{0}', space=sflag, size = 0x4, scoped, tag = 'scoped memory for tpu_custom_call.1']
    #allocation5 [shape = 'u8[786432]{0}', space=vmem, size = 0xc0000, scoped, tag = 'input window, operand 1, single buffered']
    #allocation6 [shape = 's32[1]{0}', space=sflag, size = 0x4, scoped, tag = 'scoped memory for tpu_custom_call.1']
    #allocation7 [shape = 'u8[512]{0}', space=vmem, size = 0x400, scoped, tag = 'input window, operand 2, single buffered']
    #allocation8 [shape = 'u8[32768]{0}', space=vmem, size = 0x8000, scoped, tag = 'input window, operand 3, single buffered']
    #allocation9 [shape = 's32[1]{0}', space=sflag, size = 0x4, scoped, tag = 'scoped memory for tpu_custom_call.1']
    #allocation10 [shape = 'u8[512]{0}', space=vmem, size = 0x400, scoped, tag = 'input window, operand 4, single buffered']
    #allocation11 [shape = 'u8[32768]{0}', space=vmem, size = 0x8000, scoped, tag = 'input window, operand 5, single buffered']
    #allocation12 [shape = 's32[1]{0}', space=sflag, size = 0x4, scoped, tag = 'scoped memory for tpu_custom_call.1']
    #allocation13 [shape = 'u8[512]{0}', space=vmem, size = 0x400, scoped, tag = 'input window, operand 6, single buffered']
    #allocation14 [shape = 'u8[4096]{0}', space=vmem, size = 0x1000, scoped, tag = 'output window, operand 0, single buffered']
    %12 = vsyncpa [#allocation3], 0
    %13 = vsyncpa [#allocation6], 0
    %14 = vsyncpa [#allocation9], 0
    %15 = vsyncpa [#allocation12], 0
    %16 = vsyncpa [#allocation4], 0
    // Predicated region
    $region2: #{tpu_custom_call.1} parent=1 // pred_check
      _
    $region3: #{tpu_custom_call.1} parent=1 // pred_check_branch
      %18 = sbr.rel (0) target = $region5
    $region4: #{tpu_custom_call.1} parent=1 // pred_region
      %s20 = ssub.s32 1536, 1536
      %21 = vsyncadd [#allocation3], %s20
      %s23 = sshll.u32 [#allocation2], 4
      %s24 = int_to_ptr.vmem [resolvable:$true] %s23
      %26 = dma.hbm_to_vmem [thread:$0]  %s0, 1536, %s24, [#allocation3]
    $region5: #{tpu_custom_call.1} parent=1 // pred_fallthru
      _
    // Predicated region
    $region6: #{tpu_custom_call.1} parent=1 // pred_check
      _
    $region7: #{tpu_custom_call.1} parent=1 // pred_check_branch
      %28 = sbr.rel (0) target = $region9
    $region8: #{tpu_custom_call.1} parent=1 // pred_region
      %s30 = ssub.s32 24576, 24576
      %31 = vsyncadd [#allocation6], %s30
      %s32 = sshll.u32 [#allocation5], 4
      %s33 = int_to_ptr.vmem [resolvable:$true] %s32
      %38 = dma.hbm_to_vmem [thread:$0]  %s1, 24576, %s33, [#allocation6], 64, 64, 4
    $region9: #{tpu_custom_call.1} parent=1 // pred_fallthru
      _
    // Predicated region
    $region10: #{tpu_custom_call.1} parent=1 // pred_check
      _
    $region11: #{tpu_custom_call.1} parent=1 // pred_check_branch
      %40 = sbr.rel (0) target = $region13
    $region12: #{tpu_custom_call.1} parent=1 // pred_region
      %s42 = ssub.s32 16, 16
      %43 = vsyncadd [#allocation6], %s42
      %s45 = sshll.u32 [#allocation7], 4
      %s46 = int_to_ptr.vmem [resolvable:$true] %s45
      %48 = dma.hbm_to_vmem [thread:$0]  %s2, 16, %s46, [#allocation6]
    $region13: #{tpu_custom_call.1} parent=1 // pred_fallthru
      _
    // Predicated region
    $region14: #{tpu_custom_call.1} parent=1 // pred_check
      _
    $region15: #{tpu_custom_call.1} parent=1 // pred_check_branch
      %50 = sbr.rel (0) target = $region17
    $region16: #{tpu_custom_call.1} parent=1 // pred_region
      %s52 = ssub.s32 1024, 1024
      %53 = vsyncadd [#allocation9], %s52
      %s54 = sshll.u32 [#allocation8], 4
      %s55 = int_to_ptr.vmem [resolvable:$true] %s54
      %60 = dma.hbm_to_vmem [thread:$0]  %s3, 1024, %s55, [#allocation9], 64, 64, 4
    $region17: #{tpu_custom_call.1} parent=1 // pred_fallthru
      _
    // Predicated region
    $region18: #{tpu_custom_call.1} parent=1 // pred_check
      _
    $region19: #{tpu_custom_call.1} parent=1 // pred_check_branch
      %62 = sbr.rel (0) target = $region21
    $region20: #{tpu_custom_call.1} parent=1 // pred_region
      %s64 = ssub.s32 16, 16
      %65 = vsyncadd [#allocation9], %s64
      %s67 = sshll.u32 [#allocation10], 4
      %s68 = int_to_ptr.vmem [resolvable:$true] %s67
      %70 = dma.hbm_to_vmem [thread:$0]  %s4, 16, %s68, [#allocation9]
    $region21: #{tpu_custom_call.1} parent=1 // pred_fallthru
      _
    // Predicated region
    $region22: #{tpu_custom_call.1} parent=1 // pred_check
      _
    $region23: #{tpu_custom_call.1} parent=1 // pred_check_branch
      %72 = sbr.rel (0) target = $region25
    $region24: #{tpu_custom_call.1} parent=1 // pred_region
      %s74 = ssub.s32 1024, 1024
      %75 = vsyncadd [#allocation12], %s74
      %s76 = sshll.u32 [#allocation11], 4
      %s77 = int_to_ptr.vmem [resolvable:$true] %s76
      %82 = dma.hbm_to_vmem [thread:$0]  %s5, 1024, %s77, [#allocation12], 64, 64, 4
    $region25: #{tpu_custom_call.1} parent=1 // pred_fallthru
      _
    // Predicated region
    $region26: #{tpu_custom_call.1} parent=1 // pred_check
      _
    $region27: #{tpu_custom_call.1} parent=1 // pred_check_branch
      %84 = sbr.rel (0) target = $region29
    $region28: #{tpu_custom_call.1} parent=1 // pred_region
      %s86 = ssub.s32 16, 16
      %87 = vsyncadd [#allocation12], %s86
      %s89 = sshll.u32 [#allocation13], 4
      %s90 = int_to_ptr.vmem [resolvable:$true] %s89
      %92 = dma.hbm_to_vmem [thread:$0]  %s6, 16, %s90, [#allocation12]
    $region29: #{tpu_custom_call.1} parent=1 // pred_fallthru
      _
    // Predicated region
    $region30: #{tpu_custom_call.1} parent=1 // pred_check
      _
    $region31: #{tpu_custom_call.1} parent=1 // pred_check_branch
      %94 = sbr.rel (0) target = $region33
    $region32: #{tpu_custom_call.1} parent=1 // pred_region
      %95 = dma.done [#allocation3], 1536
    $region33: #{tpu_custom_call.1} parent=1 // pred_fallthru
      _
    // Predicated region
    $region34: #{tpu_custom_call.1} parent=1 // pred_check
      _
    $region35: #{tpu_custom_call.1} parent=1 // pred_check_branch
      %97 = sbr.rel (0) target = $region37
    $region36: #{tpu_custom_call.1} parent=1 // pred_region
      %98 = dma.done [#allocation6], 24576
    $region37: #{tpu_custom_call.1} parent=1 // pred_fallthru
      _
    // Predicated region
    $region38: #{tpu_custom_call.1} parent=1 // pred_check
      _
    $region39: #{tpu_custom_call.1} parent=1 // pred_check_branch
      %100 = sbr.rel (0) target = $region41
    $region40: #{tpu_custom_call.1} parent=1 // pred_region
      %101 = dma.done [#allocation6], 16
    $region41: #{tpu_custom_call.1} parent=1 // pred_fallthru
      _
    // Predicated region
    $region42: #{tpu_custom_call.1} parent=1 // pred_check
      _
    $region43: #{tpu_custom_call.1} parent=1 // pred_check_branch
      %103 = sbr.rel (0) target = $region45
    $region44: #{tpu_custom_call.1} parent=1 // pred_region
      %104 = dma.done [#allocation9], 1024
    $region45: #{tpu_custom_call.1} parent=1 // pred_fallthru
      _
    // Predicated region
    $region46: #{tpu_custom_call.1} parent=1 // pred_check
      _
    $region47: #{tpu_custom_call.1} parent=1 // pred_check_branch
      %106 = sbr.rel (0) target = $region49
    $region48: #{tpu_custom_call.1} parent=1 // pred_region
      %107 = dma.done [#allocation9], 16
    $region49: #{tpu_custom_call.1} parent=1 // pred_fallthru
      _
    // Predicated region
    $region50: #{tpu_custom_call.1} parent=1 // pred_check
      _
    $region51: #{tpu_custom_call.1} parent=1 // pred_check_branch
      %109 = sbr.rel (0) target = $region53
    $region52: #{tpu_custom_call.1} parent=1 // pred_region
      %110 = dma.done [#allocation12], 1024
    $region53: #{tpu_custom_call.1} parent=1 // pred_fallthru
      _
    // Predicated region
    $region54: #{tpu_custom_call.1} parent=1 // pred_check
      _
    $region55: #{tpu_custom_call.1} parent=1 // pred_check_branch
      %112 = sbr.rel (0) target = $region57
    $region56: #{tpu_custom_call.1} parent=1 // pred_region
      %113 = dma.done [#allocation12], 16
    $region57: #{tpu_custom_call.1} parent=1 // pred_fallthru
      _
    %v115 = vld [vmem:[#allocation2] sm:$0xff]
    %v116 = vld [vmem:[#allocation2 + $0x8] sm:$0xff]
    %v117 = vld [vmem:[#allocation2 + $0x10] sm:$0xff]
    %v118 = vld [vmem:[#allocation2 + $0x18] sm:$0xff]
    %v119 = vld [vmem:[#allocation2 + $0x20] sm:$0xff]
    %v120 = vld [vmem:[#allocation2 + $0x28] sm:$0xff]
    %v121 = vld [vmem:[#allocation2 + $0x30] sm:$0xff]
    %v122 = vld [vmem:[#allocation2 + $0x38] sm:$0xff]
    %v123 = vld [vmem:[#allocation2 + $0x40] sm:$0xff]
    %v124 = vld [vmem:[#allocation2 + $0x48] sm:$0xff]
    %v125 = vld [vmem:[#allocation2 + $0x50] sm:$0xff]
    %v126 = vld [vmem:[#allocation2 + $0x58] sm:$0xff]
    %v127 = vld [vmem:[#allocation5] sm:$0xf]
    %v128 = vld [vmem:[#allocation5 + $0x4] sm:$0xf]
    %v129 = vld [vmem:[#allocation5 + $0x8] sm:$0xf]
    %v130 = vld [vmem:[#allocation5 + $0xc] sm:$0xf]
    %v131 = vld [vmem:[#allocation5 + $0x10] sm:$0xf]
    %v132 = vld [vmem:[#allocation5 + $0x14] sm:$0xf]
    %v133 = vld [vmem:[#allocation5 + $0x18] sm:$0xf]
    %v134 = vld [vmem:[#allocation5 + $0x1c] sm:$0xf]
    %v135 = vld [vmem:[#allocation5 + $0x20] sm:$0xf]
    %v136 = vld [vmem:[#allocation5 + $0x24] sm:$0xf]
    %v137 = vld [vmem:[#allocation5 + $0x28] sm:$0xf]
    %v138 = vld [vmem:[#allocation5 + $0x2c] sm:$0xf]
    %v139 = vld [vmem:[#allocation5 + $0x30] sm:$0xf]
    %v140 = vld [vmem:[#allocation5 + $0x34] sm:$0xf]
    %v141 = vld [vmem:[#allocation5 + $0x38] sm:$0xf]
    %v142 = vld [vmem:[#allocation5 + $0x3c] sm:$0xf]
    %v143 = vld [vmem:[#allocation5 + $0x40] sm:$0xf]
    %v144 = vld [vmem:[#allocation5 + $0x44] sm:$0xf]
    %v145 = vld [vmem:[#allocation5 + $0x48] sm:$0xf]
    %v146 = vld [vmem:[#allocation5 + $0x4c] sm:$0xf]
    %v147 = vld [vmem:[#allocation5 + $0x50] sm:$0xf]
    %v148 = vld [vmem:[#allocation5 + $0x54] sm:$0xf]
    %v149 = vld [vmem:[#allocation5 + $0x58] sm:$0xf]
    %v150 = vld [vmem:[#allocation5 + $0x5c] sm:$0xf]
    %v151 = vld [vmem:[#allocation5 + $0x60] sm:$0xf]
    %v152 = vld [vmem:[#allocation5 + $0x64] sm:$0xf]
    %v153 = vld [vmem:[#allocation5 + $0x68] sm:$0xf]
    %v154 = vld [vmem:[#allocation5 + $0x6c] sm:$0xf]
    %v155 = vld [vmem:[#allocation5 + $0x70] sm:$0xf]
    %v156 = vld [vmem:[#allocation5 + $0x74] sm:$0xf]
    %v157 = vld [vmem:[#allocation5 + $0x78] sm:$0xf]
    %v158 = vld [vmem:[#allocation5 + $0x7c] sm:$0xf]
    %v159 = vld [vmem:[#allocation5 + $0x80] sm:$0xf]
    %v160 = vld [vmem:[#allocation5 + $0x84] sm:$0xf]
    %v161 = vld [vmem:[#allocation5 + $0x88] sm:$0xf]
    %v162 = vld [vmem:[#allocation5 + $0x8c] sm:$0xf]
    %v163 = vld [vmem:[#allocation5 + $0x90] sm:$0xf]
    %v164 = vld [vmem:[#allocation5 + $0x94] sm:$0xf]
    %v165 = vld [vmem:[#allocation5 + $0x98] sm:$0xf]
    %v166 = vld [vmem:[#allocation5 + $0x9c] sm:$0xf]
    %v167 = vld [vmem:[#allocation5 + $0xa0] sm:$0xf]
    %v168 = vld [vmem:[#allocation5 + $0xa4] sm:$0xf]
    %v169 = vld [vmem:[#allocation5 + $0xa8] sm:$0xf]
    %v170 = vld [vmem:[#allocation5 + $0xac] sm:$0xf]
    %v171 = vld [vmem:[#allocation5 + $0xb0] sm:$0xf]
    %v172 = vld [vmem:[#allocation5 + $0xb4] sm:$0xf]
    %v173 = vld [vmem:[#allocation5 + $0xb8] sm:$0xf]
    %v174 = vld [vmem:[#allocation5 + $0xbc] sm:$0xf]
    %v175 = vld [vmem:[#allocation5 + $0xc0] sm:$0xf]
    %v176 = vld [vmem:[#allocation5 + $0xc4] sm:$0xf]
    %v177 = vld [vmem:[#allocation5 + $0xc8] sm:$0xf]
    %v178 = vld [vmem:[#allocation5 + $0xcc] sm:$0xf]
    %v179 = vld [vmem:[#allocation5 + $0xd0] sm:$0xf]
    %v180 = vld [vmem:[#allocation5 + $0xd4] sm:$0xf]
    %v181 = vld [vmem:[#allocation5 + $0xd8] sm:$0xf]
    %v182 = vld [vmem:[#allocation5 + $0xdc] sm:$0xf]
    %v183 = vld [vmem:[#allocation5 + $0xe0] sm:$0xf]
    %v184 = vld [vmem:[#allocation5 + $0xe4] sm:$0xf]
    %v185 = vld [vmem:[#allocation5 + $0xe8] sm:$0xf]
    %v186 = vld [vmem:[#allocation5 + $0xec] sm:$0xf]
    %v187 = vld [vmem:[#allocation5 + $0xf0] sm:$0xf]
    %v188 = vld [vmem:[#allocation5 + $0xf4] sm:$0xf]
    %v189 = vld [vmem:[#allocation5 + $0xf8] sm:$0xf]
    %v190 = vld [vmem:[#allocation5 + $0xfc] sm:$0xf]
    %v191 = vld [vmem:[#allocation5 + $0x100] sm:$0xf]
    %v192 = vld [vmem:[#allocation5 + $0x104] sm:$0xf]
    %v193 = vld [vmem:[#allocation5 + $0x108] sm:$0xf]
    %v194 = vld [vmem:[#allocation5 + $0x10c] sm:$0xf]
    %v195 = vld [vmem:[#allocation5 + $0x110] sm:$0xf]
    %v196 = vld [vmem:[#allocation5 + $0x114] sm:$0xf]
    %v197 = vld [vmem:[#allocation5 + $0x118] sm:$0xf]
    %v198 = vld [vmem:[#allocation5 + $0x11c] sm:$0xf]
    %v199 = vld [vmem:[#allocation5 + $0x120] sm:$0xf]
    %v200 = vld [vmem:[#allocation5 + $0x124] sm:$0xf]
    %v201 = vld [vmem:[#allocation5 + $0x128] sm:$0xf]
    %v202 = vld [vmem:[#allocation5 + $0x12c] sm:$0xf]
    %v203 = vld [vmem:[#allocation5 + $0x130] sm:$0xf]
    %v204 = vld [vmem:[#allocation5 + $0x134] sm:$0xf]
    %v205 = vld [vmem:[#allocation5 + $0x138] sm:$0xf]
    %v206 = vld [vmem:[#allocation5 + $0x13c] sm:$0xf]
    %v207 = vld [vmem:[#allocation5 + $0x140] sm:$0xf]
    %v208 = vld [vmem:[#allocation5 + $0x144] sm:$0xf]
    %v209 = vld [vmem:[#allocation5 + $0x148] sm:$0xf]
    %v210 = vld [vmem:[#allocation5 + $0x14c] sm:$0xf]
    %v211 = vld [vmem:[#allocation5 + $0x150] sm:$0xf]
    %v212 = vld [vmem:[#allocation5 + $0x154] sm:$0xf]
    %v213 = vld [vmem:[#allocation5 + $0x158] sm:$0xf]
    %v214 = vld [vmem:[#allocation5 + $0x15c] sm:$0xf]
    %v215 = vld [vmem:[#allocation5 + $0x160] sm:$0xf]
    %v216 = vld [vmem:[#allocation5 + $0x164] sm:$0xf]
    %v217 = vld [vmem:[#allocation5 + $0x168] sm:$0xf]
    %v218 = vld [vmem:[#allocation5 + $0x16c] sm:$0xf]
    %v219 = vld [vmem:[#allocation5 + $0x170] sm:$0xf]
    %v220 = vld [vmem:[#allocation5 + $0x174] sm:$0xf]
    %v221 = vld [vmem:[#allocation5 + $0x178] sm:$0xf]
    %v222 = vld [vmem:[#allocation5 + $0x17c] sm:$0xf]
    %v223 = vld [vmem:[#allocation5 + $0x180] sm:$0xf]
    %v224 = vld [vmem:[#allocation5 + $0x184] sm:$0xf]
    %v225 = vld [vmem:[#allocation5 + $0x188] sm:$0xf]
    %v226 = vld [vmem:[#allocation5 + $0x18c] sm:$0xf]
    %v227 = vld [vmem:[#allocation5 + $0x190] sm:$0xf]
    %v228 = vld [vmem:[#allocation5 + $0x194] sm:$0xf]
    %v229 = vld [vmem:[#allocation5 + $0x198] sm:$0xf]
    %v230 = vld [vmem:[#allocation5 + $0x19c] sm:$0xf]
    %v231 = vld [vmem:[#allocation5 + $0x1a0] sm:$0xf]
    %v232 = vld [vmem:[#allocation5 + $0x1a4] sm:$0xf]
    %v233 = vld [vmem:[#allocation5 + $0x1a8] sm:$0xf]
    %v234 = vld [vmem:[#allocation5 + $0x1ac] sm:$0xf]
    %v235 = vld [vmem:[#allocation5 + $0x1b0] sm:$0xf]
    %v236 = vld [vmem:[#allocation5 + $0x1b4] sm:$0xf]
    %v237 = vld [vmem:[#allocation5 + $0x1b8] sm:$0xf]
    %v238 = vld [vmem:[#allocation5 + $0x1bc] sm:$0xf]
    %v239 = vld [vmem:[#allocation5 + $0x1c0] sm:$0xf]
    %v240 = vld [vmem:[#allocation5 + $0x1c4] sm:$0xf]
    %v241 = vld [vmem:[#allocation5 + $0x1c8] sm:$0xf]
    %v242 = vld [vmem:[#allocation5 + $0x1cc] sm:$0xf]
    %v243 = vld [vmem:[#allocation5 + $0x1d0] sm:$0xf]
    %v244 = vld [vmem:[#allocation5 + $0x1d4] sm:$0xf]
    %v245 = vld [vmem:[#allocation5 + $0x1d8] sm:$0xf]
    %v246 = vld [vmem:[#allocation5 + $0x1dc] sm:$0xf]
    %v247 = vld [vmem:[#allocation5 + $0x1e0] sm:$0xf]
    %v248 = vld [vmem:[#allocation5 + $0x1e4] sm:$0xf]
    %v249 = vld [vmem:[#allocation5 + $0x1e8] sm:$0xf]
    %v250 = vld [vmem:[#allocation5 + $0x1ec] sm:$0xf]
    %v251 = vld [vmem:[#allocation5 + $0x1f0] sm:$0xf]
    %v252 = vld [vmem:[#allocation5 + $0x1f4] sm:$0xf]
    %v253 = vld [vmem:[#allocation5 + $0x1f8] sm:$0xf]
    %v254 = vld [vmem:[#allocation5 + $0x1fc] sm:$0xf]
    %v255 = vld [vmem:[#allocation5 + $0x200] sm:$0xf]
    %v256 = vld [vmem:[#allocation5 + $0x204] sm:$0xf]
    %v257 = vld [vmem:[#allocation5 + $0x208] sm:$0xf]
    %v258 = vld [vmem:[#allocation5 + $0x20c] sm:$0xf]
    %v259 = vld [vmem:[#allocation5 + $0x210] sm:$0xf]
    %v260 = vld [vmem:[#allocation5 + $0x214] sm:$0xf]
    %v261 = vld [vmem:[#allocation5 + $0x218] sm:$0xf]
    %v262 = vld [vmem:[#allocation5 + $0x21c] sm:$0xf]
    %v263 = vld [vmem:[#allocation5 + $0x220] sm:$0xf]
    %v264 = vld [vmem:[#allocation5 + $0x224] sm:$0xf]
    %v265 = vld [vmem:[#allocation5 + $0x228] sm:$0xf]
    %v266 = vld [vmem:[#allocation5 + $0x22c] sm:$0xf]
    %v267 = vld [vmem:[#allocation5 + $0x230] sm:$0xf]
    %v268 = vld [vmem:[#allocation5 + $0x234] sm:$0xf]
    %v269 = vld [vmem:[#allocation5 + $0x238] sm:$0xf]
    %v270 = vld [vmem:[#allocation5 + $0x23c] sm:$0xf]
    %v271 = vld [vmem:[#allocation5 + $0x240] sm:$0xf]
    %v272 = vld [vmem:[#allocation5 + $0x244] sm:$0xf]
    %v273 = vld [vmem:[#allocation5 + $0x248] sm:$0xf]
    %v274 = vld [vmem:[#allocation5 + $0x24c] sm:$0xf]
    %v275 = vld [vmem:[#allocation5 + $0x250] sm:$0xf]
    %v276 = vld [vmem:[#allocation5 + $0x254] sm:$0xf]
    %v277 = vld [vmem:[#allocation5 + $0x258] sm:$0xf]
    %v278 = vld [vmem:[#allocation5 + $0x25c] sm:$0xf]
    %v279 = vld [vmem:[#allocation5 + $0x260] sm:$0xf]
    %v280 = vld [vmem:[#allocation5 + $0x264] sm:$0xf]
    %v281 = vld [vmem:[#allocation5 + $0x268] sm:$0xf]
    %v282 = vld [vmem:[#allocation5 + $0x26c] sm:$0xf]
    %v283 = vld [vmem:[#allocation5 + $0x270] sm:$0xf]
    %v284 = vld [vmem:[#allocation5 + $0x274] sm:$0xf]
    %v285 = vld [vmem:[#allocation5 + $0x278] sm:$0xf]
    %v286 = vld [vmem:[#allocation5 + $0x27c] sm:$0xf]
    %v287 = vld [vmem:[#allocation5 + $0x280] sm:$0xf]
    %v288 = vld [vmem:[#allocation5 + $0x284] sm:$0xf]
    %v289 = vld [vmem:[#allocation5 + $0x288] sm:$0xf]
    %v290 = vld [vmem:[#allocation5 + $0x28c] sm:$0xf]
    %v291 = vld [vmem:[#allocation5 + $0x290] sm:$0xf]
    %v292 = vld [vmem:[#allocation5 + $0x294] sm:$0xf]
    %v293 = vld [vmem:[#allocation5 + $0x298] sm:$0xf]
    %v294 = vld [vmem:[#allocation5 + $0x29c] sm:$0xf]
    %v295 = vld [vmem:[#allocation5 + $0x2a0] sm:$0xf]
    %v296 = vld [vmem:[#allocation5 + $0x2a4] sm:$0xf]
    %v297 = vld [vmem:[#allocation5 + $0x2a8] sm:$0xf]
    %v298 = vld [vmem:[#allocation5 + $0x2ac] sm:$0xf]
    %v299 = vld [vmem:[#allocation5 + $0x2b0] sm:$0xf]
    %v300 = vld [vmem:[#allocation5 + $0x2b4] sm:$0xf]
    %v301 = vld [vmem:[#allocation5 + $0x2b8] sm:$0xf]
    %v302 = vld [vmem:[#allocation5 + $0x2bc] sm:$0xf]
    %v303 = vld [vmem:[#allocation5 + $0x2c0] sm:$0xf]
    %v304 = vld [vmem:[#allocation5 + $0x2c4] sm:$0xf]
    %v305 = vld [vmem:[#allocation5 + $0x2c8] sm:$0xf]
    %v306 = vld [vmem:[#allocation5 + $0x2cc] sm:$0xf]
    %v307 = vld [vmem:[#allocation5 + $0x2d0] sm:$0xf]
    %v308 = vld [vmem:[#allocation5 + $0x2d4] sm:$0xf]
    %v309 = vld [vmem:[#allocation5 + $0x2d8] sm:$0xf]
    %v310 = vld [vmem:[#allocation5 + $0x2dc] sm:$0xf]
    %v311 = vld [vmem:[#allocation5 + $0x2e0] sm:$0xf]
    %v312 = vld [vmem:[#allocation5 + $0x2e4] sm:$0xf]
    %v313 = vld [vmem:[#allocation5 + $0x2e8] sm:$0xf]
    %v314 = vld [vmem:[#allocation5 + $0x2ec] sm:$0xf]
    %v315 = vld [vmem:[#allocation5 + $0x2f0] sm:$0xf]
    %v316 = vld [vmem:[#allocation5 + $0x2f4] sm:$0xf]
    %v317 = vld [vmem:[#allocation5 + $0x2f8] sm:$0xf]
    %v318 = vld [vmem:[#allocation5 + $0x2fc] sm:$0xf]
    %v319 = vld [vmem:[#allocation5 + $0x300] sm:$0xf]
    %v320 = vld [vmem:[#allocation5 + $0x304] sm:$0xf]
    %v321 = vld [vmem:[#allocation5 + $0x308] sm:$0xf]
    %v322 = vld [vmem:[#allocation5 + $0x30c] sm:$0xf]
    %v323 = vld [vmem:[#allocation5 + $0x310] sm:$0xf]
    %v324 = vld [vmem:[#allocation5 + $0x314] sm:$0xf]
    %v325 = vld [vmem:[#allocation5 + $0x318] sm:$0xf]
    %v326 = vld [vmem:[#allocation5 + $0x31c] sm:$0xf]
    %v327 = vld [vmem:[#allocation5 + $0x320] sm:$0xf]
    %v328 = vld [vmem:[#allocation5 + $0x324] sm:$0xf]
    %v329 = vld [vmem:[#allocation5 + $0x328] sm:$0xf]
    %v330 = vld [vmem:[#allocation5 + $0x32c] sm:$0xf]
    %v331 = vld [vmem:[#allocation5 + $0x330] sm:$0xf]
    %v332 = vld [vmem:[#allocation5 + $0x334] sm:$0xf]
    %v333 = vld [vmem:[#allocation5 + $0x338] sm:$0xf]
    %v334 = vld [vmem:[#allocation5 + $0x33c] sm:$0xf]
    %v335 = vld [vmem:[#allocation5 + $0x340] sm:$0xf]
    %v336 = vld [vmem:[#allocation5 + $0x344] sm:$0xf]
    %v337 = vld [vmem:[#allocation5 + $0x348] sm:$0xf]
    %v338 = vld [vmem:[#allocation5 + $0x34c] sm:$0xf]
    %v339 = vld [vmem:[#allocation5 + $0x350] sm:$0xf]
    %v340 = vld [vmem:[#allocation5 + $0x354] sm:$0xf]
    %v341 = vld [vmem:[#allocation5 + $0x358] sm:$0xf]
    %v342 = vld [vmem:[#allocation5 + $0x35c] sm:$0xf]
    %v343 = vld [vmem:[#allocation5 + $0x360] sm:$0xf]
    %v344 = vld [vmem:[#allocation5 + $0x364] sm:$0xf]
    %v345 = vld [vmem:[#allocation5 + $0x368] sm:$0xf]
    %v346 = vld [vmem:[#allocation5 + $0x36c] sm:$0xf]
    %v347 = vld [vmem:[#allocation5 + $0x370] sm:$0xf]
    %v348 = vld [vmem:[#allocation5 + $0x374] sm:$0xf]
    %v349 = vld [vmem:[#allocation5 + $0x378] sm:$0xf]
    %v350 = vld [vmem:[#allocation5 + $0x37c] sm:$0xf]
    %v351 = vld [vmem:[#allocation5 + $0x380] sm:$0xf]
    %v352 = vld [vmem:[#allocation5 + $0x384] sm:$0xf]
    %v353 = vld [vmem:[#allocation5 + $0x388] sm:$0xf]
    %v354 = vld [vmem:[#allocation5 + $0x38c] sm:$0xf]
    %v355 = vld [vmem:[#allocation5 + $0x390] sm:$0xf]
    %v356 = vld [vmem:[#allocation5 + $0x394] sm:$0xf]
    %v357 = vld [vmem:[#allocation5 + $0x398] sm:$0xf]
    %v358 = vld [vmem:[#allocation5 + $0x39c] sm:$0xf]
    %v359 = vld [vmem:[#allocation5 + $0x3a0] sm:$0xf]
    %v360 = vld [vmem:[#allocation5 + $0x3a4] sm:$0xf]
    %v361 = vld [vmem:[#allocation5 + $0x3a8] sm:$0xf]
    %v362 = vld [vmem:[#allocation5 + $0x3ac] sm:$0xf]
    %v363 = vld [vmem:[#allocation5 + $0x3b0] sm:$0xf]
    %v364 = vld [vmem:[#allocation5 + $0x3b4] sm:$0xf]
    %v365 = vld [vmem:[#allocation5 + $0x3b8] sm:$0xf]
    %v366 = vld [vmem:[#allocation5 + $0x3bc] sm:$0xf]
    %v367 = vld [vmem:[#allocation5 + $0x3c0] sm:$0xf]
    %v368 = vld [vmem:[#allocation5 + $0x3c4] sm:$0xf]
    %v369 = vld [vmem:[#allocation5 + $0x3c8] sm:$0xf]
    %v370 = vld [vmem:[#allocation5 + $0x3cc] sm:$0xf]
    %v371 = vld [vmem:[#allocation5 + $0x3d0] sm:$0xf]
    %v372 = vld [vmem:[#allocation5 + $0x3d4] sm:$0xf]
    %v373 = vld [vmem:[#allocation5 + $0x3d8] sm:$0xf]
    %v374 = vld [vmem:[#allocation5 + $0x3dc] sm:$0xf]
    %v375 = vld [vmem:[#allocation5 + $0x3e0] sm:$0xf]
    %v376 = vld [vmem:[#allocation5 + $0x3e4] sm:$0xf]
    %v377 = vld [vmem:[#allocation5 + $0x3e8] sm:$0xf]
    %v378 = vld [vmem:[#allocation5 + $0x3ec] sm:$0xf]
    %v379 = vld [vmem:[#allocation5 + $0x3f0] sm:$0xf]
    %v380 = vld [vmem:[#allocation5 + $0x3f4] sm:$0xf]
    %v381 = vld [vmem:[#allocation5 + $0x3f8] sm:$0xf]
    %v382 = vld [vmem:[#allocation5 + $0x3fc] sm:$0xf]
    %v383 = vld [vmem:[#allocation5 + $0x400] sm:$0xf]
    %v384 = vld [vmem:[#allocation5 + $0x404] sm:$0xf]
    %v385 = vld [vmem:[#allocation5 + $0x408] sm:$0xf]
    %v386 = vld [vmem:[#allocation5 + $0x40c] sm:$0xf]
    %v387 = vld [vmem:[#allocation5 + $0x410] sm:$0xf]
    %v388 = vld [vmem:[#allocation5 + $0x414] sm:$0xf]
    %v389 = vld [vmem:[#allocation5 + $0x418] sm:$0xf]
    %v390 = vld [vmem:[#allocation5 + $0x41c] sm:$0xf]
    %v391 = vld [vmem:[#allocation5 + $0x420] sm:$0xf]
    %v392 = vld [vmem:[#allocation5 + $0x424] sm:$0xf]
    %v393 = vld [vmem:[#allocation5 + $0x428] sm:$0xf]
    %v394 = vld [vmem:[#allocation5 + $0x42c] sm:$0xf]
    %v395 = vld [vmem:[#allocation5 + $0x430] sm:$0xf]
    %v396 = vld [vmem:[#allocation5 + $0x434] sm:$0xf]
    %v397 = vld [vmem:[#allocation5 + $0x438] sm:$0xf]
    %v398 = vld [vmem:[#allocation5 + $0x43c] sm:$0xf]
    %v399 = vld [vmem:[#allocation5 + $0x440] sm:$0xf]
    %v400 = vld [vmem:[#allocation5 + $0x444] sm:$0xf]
    %v401 = vld [vmem:[#allocation5 + $0x448] sm:$0xf]
    %v402 = vld [vmem:[#allocation5 + $0x44c] sm:$0xf]
    %v403 = vld [vmem:[#allocation5 + $0x450] sm:$0xf]
    %v404 = vld [vmem:[#allocation5 + $0x454] sm:$0xf]
    %v405 = vld [vmem:[#allocation5 + $0x458] sm:$0xf]
    %v406 = vld [vmem:[#allocation5 + $0x45c] sm:$0xf]
    %v407 = vld [vmem:[#allocation5 + $0x460] sm:$0xf]
    %v408 = vld [vmem:[#allocation5 + $0x464] sm:$0xf]
    %v409 = vld [vmem:[#allocation5 + $0x468] sm:$0xf]
    %v410 = vld [vmem:[#allocation5 + $0x46c] sm:$0xf]
    %v411 = vld [vmem:[#allocation5 + $0x470] sm:$0xf]
    %v412 = vld [vmem:[#allocation5 + $0x474] sm:$0xf]
    %v413 = vld [vmem:[#allocation5 + $0x478] sm:$0xf]
    %v414 = vld [vmem:[#allocation5 + $0x47c] sm:$0xf]
    %v415 = vld [vmem:[#allocation5 + $0x480] sm:$0xf]
    %v416 = vld [vmem:[#allocation5 + $0x484] sm:$0xf]
    %v417 = vld [vmem:[#allocation5 + $0x488] sm:$0xf]
    %v418 = vld [vmem:[#allocation5 + $0x48c] sm:$0xf]
    %v419 = vld [vmem:[#allocation5 + $0x490] sm:$0xf]
    %v420 = vld [vmem:[#allocation5 + $0x494] sm:$0xf]
    %v421 = vld [vmem:[#allocation5 + $0x498] sm:$0xf]
    %v422 = vld [vmem:[#allocation5 + $0x49c] sm:$0xf]
    %v423 = vld [vmem:[#allocation5 + $0x4a0] sm:$0xf]
    %v424 = vld [vmem:[#allocation5 + $0x4a4] sm:$0xf]
    %v425 = vld [vmem:[#allocation5 + $0x4a8] sm:$0xf]
    %v426 = vld [vmem:[#allocation5 + $0x4ac] sm:$0xf]
    %v427 = vld [vmem:[#allocation5 + $0x4b0] sm:$0xf]
    %v428 = vld [vmem:[#allocation5 + $0x4b4] sm:$0xf]
    %v429 = vld [vmem:[#allocation5 + $0x4b8] sm:$0xf]
    %v430 = vld [vmem:[#allocation5 + $0x4bc] sm:$0xf]
    %v431 = vld [vmem:[#allocation5 + $0x4c0] sm:$0xf]
    %v432 = vld [vmem:[#allocation5 + $0x4c4] sm:$0xf]
    %v433 = vld [vmem:[#allocation5 + $0x4c8] sm:$0xf]
    %v434 = vld [vmem:[#allocation5 + $0x4cc] sm:$0xf]
    %v435 = vld [vmem:[#allocation5 + $0x4d0] sm:$0xf]
    %v436 = vld [vmem:[#allocation5 + $0x4d4] sm:$0xf]
    %v437 = vld [vmem:[#allocation5 + $0x4d8] sm:$0xf]
    %v438 = vld [vmem:[#allocation5 + $0x4dc] sm:$0xf]
    %v439 = vld [vmem:[#allocation5 + $0x4e0] sm:$0xf]
    %v440 = vld [vmem:[#allocation5 + $0x4e4] sm:$0xf]
    %v441 = vld [vmem:[#allocation5 + $0x4e8] sm:$0xf]
    %v442 = vld [vmem:[#allocation5 + $0x4ec] sm:$0xf]
    %v443 = vld [vmem:[#allocation5 + $0x4f0] sm:$0xf]
    %v444 = vld [vmem:[#allocation5 + $0x4f4] sm:$0xf]
    %v445 = vld [vmem:[#allocation5 + $0x4f8] sm:$0xf]
    %v446 = vld [vmem:[#allocation5 + $0x4fc] sm:$0xf]
    %v447 = vld [vmem:[#allocation5 + $0x500] sm:$0xf]
    %v448 = vld [vmem:[#allocation5 + $0x504] sm:$0xf]
    %v449 = vld [vmem:[#allocation5 + $0x508] sm:$0xf]
    %v450 = vld [vmem:[#allocation5 + $0x50c] sm:$0xf]
    %v451 = vld [vmem:[#allocation5 + $0x510] sm:$0xf]
    %v452 = vld [vmem:[#allocation5 + $0x514] sm:$0xf]
    %v453 = vld [vmem:[#allocation5 + $0x518] sm:$0xf]
    %v454 = vld [vmem:[#allocation5 + $0x51c] sm:$0xf]
    %v455 = vld [vmem:[#allocation5 + $0x520] sm:$0xf]
    %v456 = vld [vmem:[#allocation5 + $0x524] sm:$0xf]
    %v457 = vld [vmem:[#allocation5 + $0x528] sm:$0xf]
    %v458 = vld [vmem:[#allocation5 + $0x52c] sm:$0xf]
    %v459 = vld [vmem:[#allocation5 + $0x530] sm:$0xf]
    %v460 = vld [vmem:[#allocation5 + $0x534] sm:$0xf]
    %v461 = vld [vmem:[#allocation5 + $0x538] sm:$0xf]
    %v462 = vld [vmem:[#allocation5 + $0x53c] sm:$0xf]
    %v463 = vld [vmem:[#allocation5 + $0x540] sm:$0xf]
    %v464 = vld [vmem:[#allocation5 + $0x544] sm:$0xf]
    %v465 = vld [vmem:[#allocation5 + $0x548] sm:$0xf]
    %v466 = vld [vmem:[#allocation5 + $0x54c] sm:$0xf]
    %v467 = vld [vmem:[#allocation5 + $0x550] sm:$0xf]
    %v468 = vld [vmem:[#allocation5 + $0x554] sm:$0xf]
    %v469 = vld [vmem:[#allocation5 + $0x558] sm:$0xf]
    %v470 = vld [vmem:[#allocation5 + $0x55c] sm:$0xf]
    %v471 = vld [vmem:[#allocation5 + $0x560] sm:$0xf]
    %v472 = vld [vmem:[#allocation5 + $0x564] sm:$0xf]
    %v473 = vld [vmem:[#allocation5 + $0x568] sm:$0xf]
    %v474 = vld [vmem:[#allocation5 + $0x56c] sm:$0xf]
    %v475 = vld [vmem:[#allocation5 + $0x570] sm:$0xf]
    %v476 = vld [vmem:[#allocation5 + $0x574] sm:$0xf]
    %v477 = vld [vmem:[#allocation5 + $0x578] sm:$0xf]
    %v478 = vld [vmem:[#allocation5 + $0x57c] sm:$0xf]
    %v479 = vld [vmem:[#allocation5 + $0x580] sm:$0xf]
    %v480 = vld [vmem:[#allocation5 + $0x584] sm:$0xf]
    %v481 = vld [vmem:[#allocation5 + $0x588] sm:$0xf]
    %v482 = vld [vmem:[#allocation5 + $0x58c] sm:$0xf]
    %v483 = vld [vmem:[#allocation5 + $0x590] sm:$0xf]
    %v484 = vld [vmem:[#allocation5 + $0x594] sm:$0xf]
    %v485 = vld [vmem:[#allocation5 + $0x598] sm:$0xf]
    %v486 = vld [vmem:[#allocation5 + $0x59c] sm:$0xf]
    %v487 = vld [vmem:[#allocation5 + $0x5a0] sm:$0xf]
    %v488 = vld [vmem:[#allocation5 + $0x5a4] sm:$0xf]
    %v489 = vld [vmem:[#allocation5 + $0x5a8] sm:$0xf]
    %v490 = vld [vmem:[#allocation5 + $0x5ac] sm:$0xf]
    %v491 = vld [vmem:[#allocation5 + $0x5b0] sm:$0xf]
    %v492 = vld [vmem:[#allocation5 + $0x5b4] sm:$0xf]
    %v493 = vld [vmem:[#allocation5 + $0x5b8] sm:$0xf]
    %v494 = vld [vmem:[#allocation5 + $0x5bc] sm:$0xf]
    %v495 = vld [vmem:[#allocation5 + $0x5c0] sm:$0xf]
    %v496 = vld [vmem:[#allocation5 + $0x5c4] sm:$0xf]
    %v497 = vld [vmem:[#allocation5 + $0x5c8] sm:$0xf]
    %v498 = vld [vmem:[#allocation5 + $0x5cc] sm:$0xf]
    %v499 = vld [vmem:[#allocation5 + $0x5d0] sm:$0xf]
    %v500 = vld [vmem:[#allocation5 + $0x5d4] sm:$0xf]
    %v501 = vld [vmem:[#allocation5 + $0x5d8] sm:$0xf]
    %v502 = vld [vmem:[#allocation5 + $0x5dc] sm:$0xf]
    %v503 = vld [vmem:[#allocation5 + $0x5e0] sm:$0xf]
    %v504 = vld [vmem:[#allocation5 + $0x5e4] sm:$0xf]
    %v505 = vld [vmem:[#allocation5 + $0x5e8] sm:$0xf]
    %v506 = vld [vmem:[#allocation5 + $0x5ec] sm:$0xf]
    %v507 = vld [vmem:[#allocation5 + $0x5f0] sm:$0xf]
    %v508 = vld [vmem:[#allocation5 + $0x5f4] sm:$0xf]
    %v509 = vld [vmem:[#allocation5 + $0x5f8] sm:$0xf]
    %v510 = vld [vmem:[#allocation5 + $0x5fc] sm:$0xf]
    %v511 = vld [vmem:[#allocation7] sm:$0x1]
    %v513 = vlaneseq
    %v514 = vshrl.u32 %v513, 7
    %v515 = vsub.s32 0, %v514
    %v516 = vrot.slane %v511, %v515
    %v530 = vunpack.c.l.b16 %v115
    %v531 = vunpack.c.h.b16 %v115
    %v532 = vunpack.c.l.b16 %v116
    %v533 = vunpack.c.h.b16 %v116
    %v534 = vunpack.c.l.b16 %v117
    %v535 = vunpack.c.h.b16 %v117
    %v536 = vunpack.c.l.b16 %v118
    %v537 = vunpack.c.h.b16 %v118
    %v538 = vunpack.c.l.b16 %v119
    %v539 = vunpack.c.h.b16 %v119
    %v540 = vunpack.c.l.b16 %v120
    %v541 = vunpack.c.h.b16 %v120
    %v542 = vunpack.c.l.b16 %v121
    %v543 = vunpack.c.h.b16 %v121
    %v544 = vunpack.c.l.b16 %v122
    %v545 = vunpack.c.h.b16 %v122
    %v546 = vunpack.c.l.b16 %v123
    %v547 = vunpack.c.h.b16 %v123
    %v548 = vunpack.c.l.b16 %v124
    %v549 = vunpack.c.h.b16 %v124
    %v550 = vunpack.c.l.b16 %v125
    %v551 = vunpack.c.h.b16 %v125
    %v552 = vunpack.c.l.b16 %v126
    %v553 = vunpack.c.h.b16 %v126
    %v554 = vpack.c.b16 %v530, %v530
    %v555 = vpack.c.b16 %v531, %v531
    %v556 = vpack.c.b16 %v532, %v532
    %v557 = vpack.c.b16 %v533, %v533
    %v558 = vpack.c.b16 %v534, %v534
    %v559 = vpack.c.b16 %v535, %v535
    %v560 = vpack.c.b16 %v536, %v536
    %v561 = vpack.c.b16 %v537, %v537
    %v562 = vpack.c.b16 %v538, %v538
    %v563 = vpack.c.b16 %v539, %v539
    %v564 = vpack.c.b16 %v540, %v540
    %v565 = vpack.c.b16 %v541, %v541
    %v566 = vpack.c.b16 %v542, %v542
    %v567 = vpack.c.b16 %v543, %v543
    %v568 = vpack.c.b16 %v544, %v544
    %v569 = vpack.c.b16 %v545, %v545
    %v570 = vpack.c.b16 %v546, %v546
    %v571 = vpack.c.b16 %v547, %v547
    %v572 = vpack.c.b16 %v548, %v548
    %v573 = vpack.c.b16 %v549, %v549
    %v574 = vpack.c.b16 %v550, %v550
    %v575 = vpack.c.b16 %v551, %v551
    %v576 = vpack.c.b16 %v552, %v552
    %v577 = vpack.c.b16 %v553, %v553
    %v986 = vunpack.c.l.b16 %v127
    %v987 = vunpack.c.l.b16 %v128
    %v988 = vunpack.c.l.b16 %v129
    %v989 = vunpack.c.l.b16 %v130
    %v990 = vunpack.c.l.b16 %v131
    %v991 = vunpack.c.l.b16 %v132
    %v992 = vunpack.c.l.b16 %v133
    %v993 = vunpack.c.l.b16 %v134
    %v994 = vunpack.c.l.b16 %v135
    %v995 = vunpack.c.l.b16 %v136
    %v996 = vunpack.c.l.b16 %v137
    %v997 = vunpack.c.l.b16 %v138
    %v998 = vunpack.c.l.b16 %v139
    %v999 = vunpack.c.l.b16 %v140
    %v1000 = vunpack.c.l.b16 %v141
    %v1001 = vunpack.c.l.b16 %v142
    %v1002 = vunpack.c.l.b16 %v143
    %v1003 = vunpack.c.l.b16 %v144
    %v1004 = vunpack.c.l.b16 %v145
    %v1005 = vunpack.c.l.b16 %v146
    %v1006 = vunpack.c.l.b16 %v147
    %v1007 = vunpack.c.l.b16 %v148
    %v1008 = vunpack.c.l.b16 %v149
    %v1009 = vunpack.c.l.b16 %v150
    %v1010 = vunpack.c.l.b16 %v151
    %v1011 = vunpack.c.l.b16 %v152
    %v1012 = vunpack.c.l.b16 %v153
    %v1013 = vunpack.c.l.b16 %v154
    %v1014 = vunpack.c.l.b16 %v155
    %v1015 = vunpack.c.l.b16 %v156
    %v1016 = vunpack.c.l.b16 %v157
    %v1017 = vunpack.c.l.b16 %v158
    %v1018 = vunpack.c.l.b16 %v159
    %v1019 = vunpack.c.l.b16 %v160
    %v1020 = vunpack.c.l.b16 %v161
    %v1021 = vunpack.c.l.b16 %v162
    %v1022 = vunpack.c.l.b16 %v163
    %v1023 = vunpack.c.l.b16 %v164
    %v1024 = vunpack.c.l.b16 %v165
    %v1025 = vunpack.c.l.b16 %v166
    %v1026 = vunpack.c.l.b16 %v167
    %v1027 = vunpack.c.l.b16 %v168
    %v1028 = vunpack.c.l.b16 %v169
    %v1029 = vunpack.c.l.b16 %v170
    %v1030 = vunpack.c.l.b16 %v171
    %v1031 = vunpack.c.l.b16 %v172
    %v1032 = vunpack.c.l.b16 %v173
    %v1033 = vunpack.c.l.b16 %v174
    %v1034 = vunpack.c.l.b16 %v175
    %v1035 = vunpack.c.l.b16 %v176
    %v1036 = vunpack.c.l.b16 %v177
    %v1037 = vunpack.c.l.b16 %v178
    %v1038 = vunpack.c.l.b16 %v179
    %v1039 = vunpack.c.l.b16 %v180
    %v1040 = vunpack.c.l.b16 %v181
    %v1041 = vunpack.c.l.b16 %v182
    %v1042 = vunpack.c.l.b16 %v183
    %v1043 = vunpack.c.l.b16 %v184
    %v1044 = vunpack.c.l.b16 %v185
    %v1045 = vunpack.c.l.b16 %v186
    %v1046 = vunpack.c.l.b16 %v187
    %v1047 = vunpack.c.l.b16 %v188
    %v1048 = vunpack.c.l.b16 %v189
    %v1049 = vunpack.c.l.b16 %v190
    %v1050 = vunpack.c.l.b16 %v191
    %v1051 = vunpack.c.l.b16 %v192
    %v1052 = vunpack.c.l.b16 %v193
    %v1053 = vunpack.c.l.b16 %v194
    %v1054 = vunpack.c.l.b16 %v195
    %v1055 = vunpack.c.l.b16 %v196
    %v1056 = vunpack.c.l.b16 %v197
    %v1057 = vunpack.c.l.b16 %v198
    %v1058 = vunpack.c.l.b16 %v199
    %v1059 = vunpack.c.l.b16 %v200
    %v1060 = vunpack.c.l.b16 %v201
    %v1061 = vunpack.c.l.b16 %v202
    %v1062 = vunpack.c.l.b16 %v203
    %v1063 = vunpack.c.l.b16 %v204
    %v1064 = vunpack.c.l.b16 %v205
    %v1065 = vunpack.c.l.b16 %v206
    %v1066 = vunpack.c.l.b16 %v207
    %v1067 = vunpack.c.l.b16 %v208
    %v1068 = vunpack.c.l.b16 %v209
    %v1069 = vunpack.c.l.b16 %v210
    %v1070 = vunpack.c.l.b16 %v211
    %v1071 = vunpack.c.l.b16 %v212
    %v1072 = vunpack.c.l.b16 %v213
    %v1073 = vunpack.c.l.b16 %v214
    %v1074 = vunpack.c.l.b16 %v215
    %v1075 = vunpack.c.l.b16 %v216
    %v1076 = vunpack.c.l.b16 %v217
    %v1077 = vunpack.c.l.b16 %v218
    %v1078 = vunpack.c.l.b16 %v219
    %v1079 = vunpack.c.l.b16 %v220
    %v1080 = vunpack.c.l.b16 %v221
    %v1081 = vunpack.c.l.b16 %v222
    %v1082 = vunpack.c.l.b16 %v223
    %v1083 = vunpack.c.l.b16 %v224
    %v1084 = vunpack.c.l.b16 %v225
    %v1085 = vunpack.c.l.b16 %v226
    %v1086 = vunpack.c.l.b16 %v227
    %v1087 = vunpack.c.l.b16 %v228
    %v1088 = vunpack.c.l.b16 %v229
    %v1089 = vunpack.c.l.b16 %v230
    %v1090 = vunpack.c.l.b16 %v231
    %v1091 = vunpack.c.l.b16 %v232
    %v1092 = vunpack.c.l.b16 %v233
    %v1093 = vunpack.c.l.b16 %v234
    %v1094 = vunpack.c.l.b16 %v235
    %v1095 = vunpack.c.l.b16 %v236
    %v1096 = vunpack.c.l.b16 %v237
    %v1097 = vunpack.c.l.b16 %v238
    %v1098 = vunpack.c.l.b16 %v239
    %v1099 = vunpack.c.l.b16 %v240
    %v1100 = vunpack.c.l.b16 %v241
    %v1101 = vunpack.c.l.b16 %v242
    %v1102 = vunpack.c.l.b16 %v243
    %v1103 = vunpack.c.l.b16 %v244
    %v1104 = vunpack.c.l.b16 %v245
    %v1105 = vunpack.c.l.b16 %v246
    %v1106 = vunpack.c.l.b16 %v247
    %v1107 = vunpack.c.l.b16 %v248
    %v1108 = vunpack.c.l.b16 %v249
    %v1109 = vunpack.c.l.b16 %v250
    %v1110 = vunpack.c.l.b16 %v251
    %v1111 = vunpack.c.l.b16 %v252
    %v1112 = vunpack.c.l.b16 %v253
    %v1113 = vunpack.c.l.b16 %v254
    %v1114 = vunpack.c.l.b16 %v255
    %v1115 = vunpack.c.l.b16 %v256
    %v1116 = vunpack.c.l.b16 %v257
    %v1117 = vunpack.c.l.b16 %v258
    %v1118 = vunpack.c.l.b16 %v259
    %v1119 = vunpack.c.l.b16 %v260
    %v1120 = vunpack.c.l.b16 %v261
    %v1121 = vunpack.c.l.b16 %v262
    %v1122 = vunpack.c.l.b16 %v263
    %v1123 = vunpack.c.l.b16 %v264
    %v1124 = vunpack.c.l.b16 %v265
    %v1125 = vunpack.c.l.b16 %v266
    %v1126 = vunpack.c.l.b16 %v267
    %v1127 = vunpack.c.l.b16 %v268
    %v1128 = vunpack.c.l.b16 %v269
    %v1129 = vunpack.c.l.b16 %v270
    %v1130 = vunpack.c.l.b16 %v271
    %v1131 = vunpack.c.l.b16 %v272
    %v1132 = vunpack.c.l.b16 %v273
    %v1133 = vunpack.c.l.b16 %v274
    %v1134 = vunpack.c.l.b16 %v275
    %v1135 = vunpack.c.l.b16 %v276
    %v1136 = vunpack.c.l.b16 %v277
    %v1137 = vunpack.c.l.b16 %v278
    %v1138 = vunpack.c.l.b16 %v279
    %v1139 = vunpack.c.l.b16 %v280
    %v1140 = vunpack.c.l.b16 %v281
    %v1141 = vunpack.c.l.b16 %v282
    %v1142 = vunpack.c.l.b16 %v283
    %v1143 = vunpack.c.l.b16 %v284
    %v1144 = vunpack.c.l.b16 %v285
    %v1145 = vunpack.c.l.b16 %v286
    %v1146 = vunpack.c.l.b16 %v287
    %v1147 = vunpack.c.l.b16 %v288
    %v1148 = vunpack.c.l.b16 %v289
    %v1149 = vunpack.c.l.b16 %v290
    %v1150 = vunpack.c.l.b16 %v291
    %v1151 = vunpack.c.l.b16 %v292
    %v1152 = vunpack.c.l.b16 %v293
    %v1153 = vunpack.c.l.b16 %v294
    %v1154 = vunpack.c.l.b16 %v295
    %v1155 = vunpack.c.l.b16 %v296
    %v1156 = vunpack.c.l.b16 %v297
    %v1157 = vunpack.c.l.b16 %v298
    %v1158 = vunpack.c.l.b16 %v299
    %v1159 = vunpack.c.l.b16 %v300
    %v1160 = vunpack.c.l.b16 %v301
    %v1161 = vunpack.c.l.b16 %v302
    %v1162 = vunpack.c.l.b16 %v303
    %v1163 = vunpack.c.l.b16 %v304
    %v1164 = vunpack.c.l.b16 %v305
    %v1165 = vunpack.c.l.b16 %v306
    %v1166 = vunpack.c.l.b16 %v307
    %v1167 = vunpack.c.l.b16 %v308
    %v1168 = vunpack.c.l.b16 %v309
    %v1169 = vunpack.c.l.b16 %v310
    %v1170 = vunpack.c.l.b16 %v311
    %v1171 = vunpack.c.l.b16 %v312
    %v1172 = vunpack.c.l.b16 %v313
    %v1173 = vunpack.c.l.b16 %v314
    %v1174 = vunpack.c.l.b16 %v315
    %v1175 = vunpack.c.l.b16 %v316
    %v1176 = vunpack.c.l.b16 %v317
    %v1177 = vunpack.c.l.b16 %v318
    %v1178 = vunpack.c.l.b16 %v319
    %v1179 = vunpack.c.l.b16 %v320
    %v1180 = vunpack.c.l.b16 %v321
    %v1181 = vunpack.c.l.b16 %v322
    %v1182 = vunpack.c.l.b16 %v323
    %v1183 = vunpack.c.l.b16 %v324
    %v1184 = vunpack.c.l.b16 %v325
    %v1185 = vunpack.c.l.b16 %v326
    %v1186 = vunpack.c.l.b16 %v327
    %v1187 = vunpack.c.l.b16 %v328
    %v1188 = vunpack.c.l.b16 %v329
    %v1189 = vunpack.c.l.b16 %v330
    %v1190 = vunpack.c.l.b16 %v331
    %v1191 = vunpack.c.l.b16 %v332
    %v1192 = vunpack.c.l.b16 %v333
    %v1193 = vunpack.c.l.b16 %v334
    %v1194 = vunpack.c.l.b16 %v335
    %v1195 = vunpack.c.l.b16 %v336
    %v1196 = vunpack.c.l.b16 %v337
    %v1197 = vunpack.c.l.b16 %v338
    %v1198 = vunpack.c.l.b16 %v339
    %v1199 = vunpack.c.l.b16 %v340
    %v1200 = vunpack.c.l.b16 %v341
    %v1201 = vunpack.c.l.b16 %v342
    %v1202 = vunpack.c.l.b16 %v343
    %v1203 = vunpack.c.l.b16 %v344
    %v1204 = vunpack.c.l.b16 %v345
    %v1205 = vunpack.c.l.b16 %v346
    %v1206 = vunpack.c.l.b16 %v347
    %v1207 = vunpack.c.l.b16 %v348
    %v1208 = vunpack.c.l.b16 %v349
    %v1209 = vunpack.c.l.b16 %v350
    %v1210 = vunpack.c.l.b16 %v351
    %v1211 = vunpack.c.l.b16 %v352
    %v1212 = vunpack.c.l.b16 %v353
    %v1213 = vunpack.c.l.b16 %v354
    %v1214 = vunpack.c.l.b16 %v355
    %v1215 = vunpack.c.l.b16 %v356
    %v1216 = vunpack.c.l.b16 %v357
    %v1217 = vunpack.c.l.b16 %v358
    %v1218 = vunpack.c.l.b16 %v359
    %v1219 = vunpack.c.l.b16 %v360
    %v1220 = vunpack.c.l.b16 %v361
    %v1221 = vunpack.c.l.b16 %v362
    %v1222 = vunpack.c.l.b16 %v363
    %v1223 = vunpack.c.l.b16 %v364
    %v1224 = vunpack.c.l.b16 %v365
    %v1225 = vunpack.c.l.b16 %v366
    %v1226 = vunpack.c.l.b16 %v367
    %v1227 = vunpack.c.l.b16 %v368
    %v1228 = vunpack.c.l.b16 %v369
    %v1229 = vunpack.c.l.b16 %v370
    %v1230 = vunpack.c.l.b16 %v371
    %v1231 = vunpack.c.l.b16 %v372
    %v1232 = vunpack.c.l.b16 %v373
    %v1233 = vunpack.c.l.b16 %v374
    %v1234 = vunpack.c.l.b16 %v375
    %v1235 = vunpack.c.l.b16 %v376
    %v1236 = vunpack.c.l.b16 %v377
    %v1237 = vunpack.c.l.b16 %v378
    %v1238 = vunpack.c.l.b16 %v379
    %v1239 = vunpack.c.l.b16 %v380
    %v1240 = vunpack.c.l.b16 %v381
    %v1241 = vunpack.c.l.b16 %v382
    %v1242 = vunpack.c.l.b16 %v383
    %v1243 = vunpack.c.l.b16 %v384
    %v1244 = vunpack.c.l.b16 %v385
    %v1245 = vunpack.c.l.b16 %v386
    %v1246 = vunpack.c.l.b16 %v387
    %v1247 = vunpack.c.l.b16 %v388
    %v1248 = vunpack.c.l.b16 %v389
    %v1249 = vunpack.c.l.b16 %v390
    %v1250 = vunpack.c.l.b16 %v391
    %v1251 = vunpack.c.l.b16 %v392
    %v1252 = vunpack.c.l.b16 %v393
    %v1253 = vunpack.c.l.b16 %v394
    %v1254 = vunpack.c.l.b16 %v395
    %v1255 = vunpack.c.l.b16 %v396
    %v1256 = vunpack.c.l.b16 %v397
    %v1257 = vunpack.c.l.b16 %v398
    %v1258 = vunpack.c.l.b16 %v399
    %v1259 = vunpack.c.l.b16 %v400
    %v1260 = vunpack.c.l.b16 %v401
    %v1261 = vunpack.c.l.b16 %v402
    %v1262 = vunpack.c.l.b16 %v403
    %v1263 = vunpack.c.l.b16 %v404
    %v1264 = vunpack.c.l.b16 %v405
    %v1265 = vunpack.c.l.b16 %v406
    %v1266 = vunpack.c.l.b16 %v407
    %v1267 = vunpack.c.l.b16 %v408
    %v1268 = vunpack.c.l.b16 %v409
    %v1269 = vunpack.c.l.b16 %v410
    %v1270 = vunpack.c.l.b16 %v411
    %v1271 = vunpack.c.l.b16 %v412
    %v1272 = vunpack.c.l.b16 %v413
    %v1273 = vunpack.c.l.b16 %v414
    %v1274 = vunpack.c.l.b16 %v415
    %v1275 = vunpack.c.l.b16 %v416
    %v1276 = vunpack.c.l.b16 %v417
    %v1277 = vunpack.c.l.b16 %v418
    %v1278 = vunpack.c.l.b16 %v419
    %v1279 = vunpack.c.l.b16 %v420
    %v1280 = vunpack.c.l.b16 %v421
    %v1281 = vunpack.c.l.b16 %v422
    %v1282 = vunpack.c.l.b16 %v423
    %v1283 = vunpack.c.l.b16 %v424
    %v1284 = vunpack.c.l.b16 %v425
    %v1285 = vunpack.c.l.b16 %v426
    %v1286 = vunpack.c.l.b16 %v427
    %v1287 = vunpack.c.l.b16 %v428
    %v1288 = vunpack.c.l.b16 %v429
    %v1289 = vunpack.c.l.b16 %v430
    %v1290 = vunpack.c.l.b16 %v431
    %v1291 = vunpack.c.l.b16 %v432
    %v1292 = vunpack.c.l.b16 %v433
    %v1293 = vunpack.c.l.b16 %v434
    %v1294 = vunpack.c.l.b16 %v435
    %v1295 = vunpack.c.l.b16 %v436
    %v1296 = vunpack.c.l.b16 %v437
    %v1297 = vunpack.c.l.b16 %v438
    %v1298 = vunpack.c.l.b16 %v439
    %v1299 = vunpack.c.l.b16 %v440
    %v1300 = vunpack.c.l.b16 %v441
    %v1301 = vunpack.c.l.b16 %v442
    %v1302 = vunpack.c.l.b16 %v443
    %v1303 = vunpack.c.l.b16 %v444
    %v1304 = vunpack.c.l.b16 %v445
    %v1305 = vunpack.c.l.b16 %v446
    %v1306 = vunpack.c.l.b16 %v447
    %v1307 = vunpack.c.l.b16 %v448
    %v1308 = vunpack.c.l.b16 %v449
    %v1309 = vunpack.c.l.b16 %v450
    %v1310 = vunpack.c.l.b16 %v451
    %v1311 = vunpack.c.l.b16 %v452
    %v1312 = vunpack.c.l.b16 %v453
    %v1313 = vunpack.c.l.b16 %v454
    %v1314 = vunpack.c.l.b16 %v455
    %v1315 = vunpack.c.l.b16 %v456
    %v1316 = vunpack.c.l.b16 %v457
    %v1317 = vunpack.c.l.b16 %v458
    %v1318 = vunpack.c.l.b16 %v459
    %v1319 = vunpack.c.l.b16 %v460
    %v1320 = vunpack.c.l.b16 %v461
    %v1321 = vunpack.c.l.b16 %v462
    %v1322 = vunpack.c.l.b16 %v463
    %v1323 = vunpack.c.l.b16 %v464
    %v1324 = vunpack.c.l.b16 %v465
    %v1325 = vunpack.c.l.b16 %v466
    %v1326 = vunpack.c.l.b16 %v467
    %v1327 = vunpack.c.l.b16 %v468
    %v1328 = vunpack.c.l.b16 %v469
    %v1329 = vunpack.c.l.b16 %v470
    %v1330 = vunpack.c.l.b16 %v471
    %v1331 = vunpack.c.l.b16 %v472
    %v1332 = vunpack.c.l.b16 %v473
    %v1333 = vunpack.c.l.b16 %v474
    %v1334 = vunpack.c.l.b16 %v475
    %v1335 = vunpack.c.l.b16 %v476
    %v1336 = vunpack.c.l.b16 %v477
    %v1337 = vunpack.c.l.b16 %v478
    %v1338 = vunpack.c.l.b16 %v479
    %v1339 = vunpack.c.l.b16 %v480
    %v1340 = vunpack.c.l.b16 %v481
    %v1341 = vunpack.c.l.b16 %v482
    %v1342 = vunpack.c.l.b16 %v483
    %v1343 = vunpack.c.l.b16 %v484
    %v1344 = vunpack.c.l.b16 %v485
    %v1345 = vunpack.c.l.b16 %v486
    %v1346 = vunpack.c.l.b16 %v487
    %v1347 = vunpack.c.l.b16 %v488
    %v1348 = vunpack.c.l.b16 %v489
    %v1349 = vunpack.c.l.b16 %v490
    %v1350 = vunpack.c.l.b16 %v491
    %v1351 = vunpack.c.l.b16 %v492
    %v1352 = vunpack.c.l.b16 %v493
    %v1353 = vunpack.c.l.b16 %v494
    %v1354 = vunpack.c.l.b16 %v495
    %v1355 = vunpack.c.l.b16 %v496
    %v1356 = vunpack.c.l.b16 %v497
    %v1357 = vunpack.c.l.b16 %v498
    %v1358 = vunpack.c.l.b16 %v499
    %v1359 = vunpack.c.l.b16 %v500
    %v1360 = vunpack.c.l.b16 %v501
    %v1361 = vunpack.c.l.b16 %v502
    %v1362 = vunpack.c.l.b16 %v503
    %v1363 = vunpack.c.l.b16 %v504
    %v1364 = vunpack.c.l.b16 %v505
    %v1365 = vunpack.c.l.b16 %v506
    %v1366 = vunpack.c.l.b16 %v507
    %v1367 = vunpack.c.l.b16 %v508
    %v1368 = vunpack.c.l.b16 %v509
    %v1369 = vunpack.c.l.b16 %v510
    %v1370 = vpack.c.b16 %v987, %v986
    %v1371 = vpack.c.b16 %v989, %v988
    %v1372 = vpack.c.b16 %v991, %v990
    %v1373 = vpack.c.b16 %v993, %v992
    %v1374 = vpack.c.b16 %v995, %v994
    %v1375 = vpack.c.b16 %v997, %v996
    %v1376 = vpack.c.b16 %v999, %v998
    %v1377 = vpack.c.b16 %v1001, %v1000
    %v1378 = vpack.c.b16 %v1003, %v1002
    %v1379 = vpack.c.b16 %v1005, %v1004
    %v1380 = vpack.c.b16 %v1007, %v1006
    %v1381 = vpack.c.b16 %v1009, %v1008
    %v1382 = vpack.c.b16 %v1011, %v1010
    %v1383 = vpack.c.b16 %v1013, %v1012
    %v1384 = vpack.c.b16 %v1015, %v1014
    %v1385 = vpack.c.b16 %v1017, %v1016
    %v1386 = vpack.c.b16 %v1019, %v1018
    %v1387 = vpack.c.b16 %v1021, %v1020
    %v1388 = vpack.c.b16 %v1023, %v1022
    %v1389 = vpack.c.b16 %v1025, %v1024
    %v1390 = vpack.c.b16 %v1027, %v1026
    %v1391 = vpack.c.b16 %v1029, %v1028
    %v1392 = vpack.c.b16 %v1031, %v1030
    %v1393 = vpack.c.b16 %v1033, %v1032
    %v1394 = vpack.c.b16 %v1035, %v1034
    %v1395 = vpack.c.b16 %v1037, %v1036
    %v1396 = vpack.c.b16 %v1039, %v1038
    %v1397 = vpack.c.b16 %v1041, %v1040
    %v1398 = vpack.c.b16 %v1043, %v1042
    %v1399 = vpack.c.b16 %v1045, %v1044
    %v1400 = vpack.c.b16 %v1047, %v1046
    %v1401 = vpack.c.b16 %v1049, %v1048
    %v1402 = vpack.c.b16 %v1051, %v1050
    %v1403 = vpack.c.b16 %v1053, %v1052
    %v1404 = vpack.c.b16 %v1055, %v1054
    %v1405 = vpack.c.b16 %v1057, %v1056
    %v1406 = vpack.c.b16 %v1059, %v1058
    %v1407 = vpack.c.b16 %v1061, %v1060
    %v1408 = vpack.c.b16 %v1063, %v1062
    %v1409 = vpack.c.b16 %v1065, %v1064
    %v1410 = vpack.c.b16 %v1067, %v1066
    %v1411 = vpack.c.b16 %v1069, %v1068
    %v1412 = vpack.c.b16 %v1071, %v1070
    %v1413 = vpack.c.b16 %v1073, %v1072
    %v1414 = vpack.c.b16 %v1075, %v1074
    %v1415 = vpack.c.b16 %v1077, %v1076
    %v1416 = vpack.c.b16 %v1079, %v1078
    %v1417 = vpack.c.b16 %v1081, %v1080
    %v1418 = vpack.c.b16 %v1083, %v1082
    %v1419 = vpack.c.b16 %v1085, %v1084
    %v1420 = vpack.c.b16 %v1087, %v1086
    %v1421 = vpack.c.b16 %v1089, %v1088
    %v1422 = vpack.c.b16 %v1091, %v1090
    %v1423 = vpack.c.b16 %v1093, %v1092
    %v1424 = vpack.c.b16 %v1095, %v1094
    %v1425 = vpack.c.b16 %v1097, %v1096
    %v1426 = vpack.c.b16 %v1099, %v1098
    %v1427 = vpack.c.b16 %v1101, %v1100
    %v1428 = vpack.c.b16 %v1103, %v1102
    %v1429 = vpack.c.b16 %v1105, %v1104
    %v1430 = vpack.c.b16 %v1107, %v1106
    %v1431 = vpack.c.b16 %v1109, %v1108
    %v1432 = vpack.c.b16 %v1111, %v1110
    %v1433 = vpack.c.b16 %v1113, %v1112
    %v1434 = vpack.c.b16 %v1115, %v1114
    %v1435 = vpack.c.b16 %v1117, %v1116
    %v1436 = vpack.c.b16 %v1119, %v1118
    %v1437 = vpack.c.b16 %v1121, %v1120
    %v1438 = vpack.c.b16 %v1123, %v1122
    %v1439 = vpack.c.b16 %v1125, %v1124
    %v1440 = vpack.c.b16 %v1127, %v1126
    %v1441 = vpack.c.b16 %v1129, %v1128
    %v1442 = vpack.c.b16 %v1131, %v1130
    %v1443 = vpack.c.b16 %v1133, %v1132
    %v1444 = vpack.c.b16 %v1135, %v1134
    %v1445 = vpack.c.b16 %v1137, %v1136
    %v1446 = vpack.c.b16 %v1139, %v1138
    %v1447 = vpack.c.b16 %v1141, %v1140
    %v1448 = vpack.c.b16 %v1143, %v1142
    %v1449 = vpack.c.b16 %v1145, %v1144
    %v1450 = vpack.c.b16 %v1147, %v1146
    %v1451 = vpack.c.b16 %v1149, %v1148
    %v1452 = vpack.c.b16 %v1151, %v1150
    %v1453 = vpack.c.b16 %v1153, %v1152
    %v1454 = vpack.c.b16 %v1155, %v1154
    %v1455 = vpack.c.b16 %v1157, %v1156
    %v1456 = vpack.c.b16 %v1159, %v1158
    %v1457 = vpack.c.b16 %v1161, %v1160
    %v1458 = vpack.c.b16 %v1163, %v1162
    %v1459 = vpack.c.b16 %v1165, %v1164
    %v1460 = vpack.c.b16 %v1167, %v1166
    %v1461 = vpack.c.b16 %v1169, %v1168
    %v1462 = vpack.c.b16 %v1171, %v1170
    %v1463 = vpack.c.b16 %v1173, %v1172
    %v1464 = vpack.c.b16 %v1175, %v1174
    %v1465 = vpack.c.b16 %v1177, %v1176
    %v1466 = vpack.c.b16 %v1179, %v1178
    %v1467 = vpack.c.b16 %v1181, %v1180
    %v1468 = vpack.c.b16 %v1183, %v1182
    %v1469 = vpack.c.b16 %v1185, %v1184
    %v1470 = vpack.c.b16 %v1187, %v1186
    %v1471 = vpack.c.b16 %v1189, %v1188
    %v1472 = vpack.c.b16 %v1191, %v1190
    %v1473 = vpack.c.b16 %v1193, %v1192
    %v1474 = vpack.c.b16 %v1195, %v1194
    %v1475 = vpack.c.b16 %v1197, %v1196
    %v1476 = vpack.c.b16 %v1199, %v1198
    %v1477 = vpack.c.b16 %v1201, %v1200
    %v1478 = vpack.c.b16 %v1203, %v1202
    %v1479 = vpack.c.b16 %v1205, %v1204
    %v1480 = vpack.c.b16 %v1207, %v1206
    %v1481 = vpack.c.b16 %v1209, %v1208
    %v1482 = vpack.c.b16 %v1211, %v1210
    %v1483 = vpack.c.b16 %v1213, %v1212
    %v1484 = vpack.c.b16 %v1215, %v1214
    %v1485 = vpack.c.b16 %v1217, %v1216
    %v1486 = vpack.c.b16 %v1219, %v1218
    %v1487 = vpack.c.b16 %v1221, %v1220
    %v1488 = vpack.c.b16 %v1223, %v1222
    %v1489 = vpack.c.b16 %v1225, %v1224
    %v1490 = vpack.c.b16 %v1227, %v1226
    %v1491 = vpack.c.b16 %v1229, %v1228
    %v1492 = vpack.c.b16 %v1231, %v1230
    %v1493 = vpack.c.b16 %v1233, %v1232
    %v1494 = vpack.c.b16 %v1235, %v1234
    %v1495 = vpack.c.b16 %v1237, %v1236
    %v1496 = vpack.c.b16 %v1239, %v1238
    %v1497 = vpack.c.b16 %v1241, %v1240
    %v1498 = vpack.c.b16 %v1243, %v1242
    %v1499 = vpack.c.b16 %v1245, %v1244
    %v1500 = vpack.c.b16 %v1247, %v1246
    %v1501 = vpack.c.b16 %v1249, %v1248
    %v1502 = vpack.c.b16 %v1251, %v1250
    %v1503 = vpack.c.b16 %v1253, %v1252
    %v1504 = vpack.c.b16 %v1255, %v1254
    %v1505 = vpack.c.b16 %v1257, %v1256
    %v1506 = vpack.c.b16 %v1259, %v1258
    %v1507 = vpack.c.b16 %v1261, %v1260
    %v1508 = vpack.c.b16 %v1263, %v1262
    %v1509 = vpack.c.b16 %v1265, %v1264
    %v1510 = vpack.c.b16 %v1267, %v1266
    %v1511 = vpack.c.b16 %v1269, %v1268
    %v1512 = vpack.c.b16 %v1271, %v1270
    %v1513 = vpack.c.b16 %v1273, %v1272
    %v1514 = vpack.c.b16 %v1275, %v1274
    %v1515 = vpack.c.b16 %v1277, %v1276
    %v1516 = vpack.c.b16 %v1279, %v1278
    %v1517 = vpack.c.b16 %v1281, %v1280
    %v1518 = vpack.c.b16 %v1283, %v1282
    %v1519 = vpack.c.b16 %v1285, %v1284
    %v1520 = vpack.c.b16 %v1287, %v1286
    %v1521 = vpack.c.b16 %v1289, %v1288
    %v1522 = vpack.c.b16 %v1291, %v1290
    %v1523 = vpack.c.b16 %v1293, %v1292
    %v1524 = vpack.c.b16 %v1295, %v1294
    %v1525 = vpack.c.b16 %v1297, %v1296
    %v1526 = vpack.c.b16 %v1299, %v1298
    %v1527 = vpack.c.b16 %v1301, %v1300
    %v1528 = vpack.c.b16 %v1303, %v1302
    %v1529 = vpack.c.b16 %v1305, %v1304
    %v1530 = vpack.c.b16 %v1307, %v1306
    %v1531 = vpack.c.b16 %v1309, %v1308
    %v1532 = vpack.c.b16 %v1311, %v1310
    %v1533 = vpack.c.b16 %v1313, %v1312
    %v1534 = vpack.c.b16 %v1315, %v1314
    %v1535 = vpack.c.b16 %v1317, %v1316
    %v1536 = vpack.c.b16 %v1319, %v1318
    %v1537 = vpack.c.b16 %v1321, %v1320
    %v1538 = vpack.c.b16 %v1323, %v1322
    %v1539 = vpack.c.b16 %v1325, %v1324
    %v1540 = vpack.c.b16 %v1327, %v1326
    %v1541 = vpack.c.b16 %v1329, %v1328
    %v1542 = vpack.c.b16 %v1331, %v1330
    %v1543 = vpack.c.b16 %v1333, %v1332
    %v1544 = vpack.c.b16 %v1335, %v1334
    %v1545 = vpack.c.b16 %v1337, %v1336
    %v1546 = vpack.c.b16 %v1339, %v1338
    %v1547 = vpack.c.b16 %v1341, %v1340
    %v1548 = vpack.c.b16 %v1343, %v1342
    %v1549 = vpack.c.b16 %v1345, %v1344
    %v1550 = vpack.c.b16 %v1347, %v1346
    %v1551 = vpack.c.b16 %v1349, %v1348
    %v1552 = vpack.c.b16 %v1351, %v1350
    %v1553 = vpack.c.b16 %v1353, %v1352
    %v1554 = vpack.c.b16 %v1355, %v1354
    %v1555 = vpack.c.b16 %v1357, %v1356
    %v1556 = vpack.c.b16 %v1359, %v1358
    %v1557 = vpack.c.b16 %v1361, %v1360
    %v1558 = vpack.c.b16 %v1363, %v1362
    %v1559 = vpack.c.b16 %v1365, %v1364
    %v1560 = vpack.c.b16 %v1367, %v1366
    %v1561 = vpack.c.b16 %v1369, %v1368
    %1754 = vmatprep.subr.bf16.mxu0 0
    %1755 = vmatpush1.bf16.msra.mxu0 %v1370
    %1756 = vmatprep.subr.bf16.mxu0 0
    %1757 = vmatpush1.bf16.msra.mxu0 %v1371
    %1758 = vmatprep.subr.bf16.mxu0 0
    %1759 = vmatpush1.bf16.msra.mxu0 %v1372
    %1760 = vmatprep.subr.bf16.mxu0 0
    %1761 = vmatpush1.bf16.msra.mxu0 %v1373
    %1762 = vmatprep.subr.bf16.mxu0 0
    %1763 = vmatpush1.bf16.msra.mxu0 %v1374
    %1764 = vmatprep.subr.bf16.mxu0 0
    %1765 = vmatpush1.bf16.msra.mxu0 %v1375
    %1766 = vmatprep.subr.bf16.mxu0 0
    %1767 = vmatpush1.bf16.msra.mxu0 %v1376
    %1768 = vmatprep.subr.bf16.mxu0 0
    %1769 = vmatpush1.bf16.msra.mxu0 %v1377
    %1770 = vmatprep.subr.bf16.mxu0 0
    %1771 = vmatpush1.bf16.msra.mxu0 %v1378
    %1772 = vmatprep.subr.bf16.mxu0 0
    %1773 = vmatpush1.bf16.msra.mxu0 %v1379
    %1774 = vmatprep.subr.bf16.mxu0 0
    %1775 = vmatpush1.bf16.msra.mxu0 %v1380
    %1776 = vmatprep.subr.bf16.mxu0 0
    %1777 = vmatpush1.bf16.msra.mxu0 %v1381
    %1778 = vmatprep.subr.bf16.mxu0 0
    %1779 = vmatpush1.bf16.msra.mxu0 %v1382
    %1780 = vmatprep.subr.bf16.mxu0 0
    %1781 = vmatpush1.bf16.msra.mxu0 %v1383
    %1782 = vmatprep.subr.bf16.mxu0 0
    %1783 = vmatpush1.bf16.msra.mxu0 %v1384
    %1784 = vmatprep.subr.bf16.mxu0 0
    %1785 = vmatpush1.bf16.msra.mxu0 %v1385
    %1786 = vmatprep.mubr.bf16.mxu0 %v555
    %1787 = vmatmul.mubr.bf16.gmra.mrb[0].mxu0 %v554
    %v1788 = vpop.f32.mrb[0].mxu0
    %v1789 = vadd.f32 %v516, %v1788
    %v1790 = vpop.f32.mrb[0].mxu0
    %v1791 = vpop.f32.mrb[0].mxu0
    %v1792 = vpop.f32.mrb[0].mxu0
    %1793 = vdwg.mxu0
    %1794 = vmatprep.subr.bf16.mxu0 0
    %1795 = vmatpush1.bf16.msra.mxu0 %v1386
    %1796 = vmatprep.subr.bf16.mxu0 0
    %1797 = vmatpush1.bf16.msra.mxu0 %v1387
    %1798 = vmatprep.subr.bf16.mxu0 0
    %1799 = vmatpush1.bf16.msra.mxu0 %v1388
    %1800 = vmatprep.subr.bf16.mxu0 0
    %1801 = vmatpush1.bf16.msra.mxu0 %v1389
    %1802 = vmatprep.subr.bf16.mxu0 0
    %1803 = vmatpush1.bf16.msra.mxu0 %v1390
    %1804 = vmatprep.subr.bf16.mxu0 0
    %1805 = vmatpush1.bf16.msra.mxu0 %v1391
    %1806 = vmatprep.subr.bf16.mxu0 0
    %1807 = vmatpush1.bf16.msra.mxu0 %v1392
    %1808 = vmatprep.subr.bf16.mxu0 0
    %1809 = vmatpush1.bf16.msra.mxu0 %v1393
    %1810 = vmatprep.subr.bf16.mxu0 0
    %1811 = vmatpush1.bf16.msra.mxu0 %v1394
    %1812 = vmatprep.subr.bf16.mxu0 0
    %1813 = vmatpush1.bf16.msra.mxu0 %v1395
    %1814 = vmatprep.subr.bf16.mxu0 0
    %1815 = vmatpush1.bf16.msra.mxu0 %v1396
    %1816 = vmatprep.subr.bf16.mxu0 0
    %1817 = vmatpush1.bf16.msra.mxu0 %v1397
    %1818 = vmatprep.subr.bf16.mxu0 0
    %1819 = vmatpush1.bf16.msra.mxu0 %v1398
    %1820 = vmatprep.subr.bf16.mxu0 0
    %1821 = vmatpush1.bf16.msra.mxu0 %v1399
    %1822 = vmatprep.subr.bf16.mxu0 0
    %1823 = vmatpush1.bf16.msra.mxu0 %v1400
    %1824 = vmatprep.subr.bf16.mxu0 0
    %1825 = vmatpush1.bf16.msra.mxu0 %v1401
    %1826 = vmatprep.mubr.bf16.mxu0 %v557
    %1827 = vmatmul.mubr.bf16.gmra.mrb[0].mxu0 %v556
    %v1828 = vpop.f32.mrb[0].mxu0
    %v1829 = vadd.f32 %v1789, %v1828
    %v1830 = vpop.f32.mrb[0].mxu0
    %v1831 = vpop.f32.mrb[0].mxu0
    %v1832 = vpop.f32.mrb[0].mxu0
    %1833 = vdwg.mxu0
    %1834 = vmatprep.subr.bf16.mxu0 0
    %1835 = vmatpush1.bf16.msra.mxu0 %v1402
    %1836 = vmatprep.subr.bf16.mxu0 0
    %1837 = vmatpush1.bf16.msra.mxu0 %v1403
    %1838 = vmatprep.subr.bf16.mxu0 0
    %1839 = vmatpush1.bf16.msra.mxu0 %v1404
    %1840 = vmatprep.subr.bf16.mxu0 0
    %1841 = vmatpush1.bf16.msra.mxu0 %v1405
    %1842 = vmatprep.subr.bf16.mxu0 0
    %1843 = vmatpush1.bf16.msra.mxu0 %v1406
    %1844 = vmatprep.subr.bf16.mxu0 0
    %1845 = vmatpush1.bf16.msra.mxu0 %v1407
    %1846 = vmatprep.subr.bf16.mxu0 0
    %1847 = vmatpush1.bf16.msra.mxu0 %v1408
    %1848 = vmatprep.subr.bf16.mxu0 0
    %1849 = vmatpush1.bf16.msra.mxu0 %v1409
    %1850 = vmatprep.subr.bf16.mxu0 0
    %1851 = vmatpush1.bf16.msra.mxu0 %v1410
    %1852 = vmatprep.subr.bf16.mxu0 0
    %1853 = vmatpush1.bf16.msra.mxu0 %v1411
    %1854 = vmatprep.subr.bf16.mxu0 0
    %1855 = vmatpush1.bf16.msra.mxu0 %v1412
    %1856 = vmatprep.subr.bf16.mxu0 0
    %1857 = vmatpush1.bf16.msra.mxu0 %v1413
    %1858 = vmatprep.subr.bf16.mxu0 0
    %1859 = vmatpush1.bf16.msra.mxu0 %v1414
    %1860 = vmatprep.subr.bf16.mxu0 0
    %1861 = vmatpush1.bf16.msra.mxu0 %v1415
    %1862 = vmatprep.subr.bf16.mxu0 0
    %1863 = vmatpush1.bf16.msra.mxu0 %v1416
    %1864 = vmatprep.subr.bf16.mxu0 0
    %1865 = vmatpush1.bf16.msra.mxu0 %v1417
    %1866 = vmatprep.mubr.bf16.mxu0 %v559
    %1867 = vmatmul.mubr.bf16.gmra.mrb[0].mxu0 %v558
    %v1868 = vpop.f32.mrb[0].mxu0
    %v1869 = vadd.f32 %v1829, %v1868
    %v1870 = vpop.f32.mrb[0].mxu0
    %v1871 = vpop.f32.mrb[0].mxu0
    %v1872 = vpop.f32.mrb[0].mxu0
    %1873 = vdwg.mxu0
    %1874 = vmatprep.subr.bf16.mxu0 0
    %1875 = vmatpush1.bf16.msra.mxu0 %v1418
    %1876 = vmatprep.subr.bf16.mxu0 0
    %1877 = vmatpush1.bf16.msra.mxu0 %v1419
    %1878 = vmatprep.subr.bf16.mxu0 0
    %1879 = vmatpush1.bf16.msra.mxu0 %v1420
    %1880 = vmatprep.subr.bf16.mxu0 0
    %1881 = vmatpush1.bf16.msra.mxu0 %v1421
    %1882 = vmatprep.subr.bf16.mxu0 0
    %1883 = vmatpush1.bf16.msra.mxu0 %v1422
    %1884 = vmatprep.subr.bf16.mxu0 0
    %1885 = vmatpush1.bf16.msra.mxu0 %v1423
    %1886 = vmatprep.subr.bf16.mxu0 0
    %1887 = vmatpush1.bf16.msra.mxu0 %v1424
    %1888 = vmatprep.subr.bf16.mxu0 0
    %1889 = vmatpush1.bf16.msra.mxu0 %v1425
    %1890 = vmatprep.subr.bf16.mxu0 0
    %1891 = vmatpush1.bf16.msra.mxu0 %v1426
    %1892 = vmatprep.subr.bf16.mxu0 0
    %1893 = vmatpush1.bf16.msra.mxu0 %v1427
    %1894 = vmatprep.subr.bf16.mxu0 0
    %1895 = vmatpush1.bf16.msra.mxu0 %v1428
    %1896 = vmatprep.subr.bf16.mxu0 0
    %1897 = vmatpush1.bf16.msra.mxu0 %v1429
    %1898 = vmatprep.subr.bf16.mxu0 0
    %1899 = vmatpush1.bf16.msra.mxu0 %v1430
    %1900 = vmatprep.subr.bf16.mxu0 0
    %1901 = vmatpush1.bf16.msra.mxu0 %v1431
    %1902 = vmatprep.subr.bf16.mxu0 0
    %1903 = vmatpush1.bf16.msra.mxu0 %v1432
    %1904 = vmatprep.subr.bf16.mxu0 0
    %1905 = vmatpush1.bf16.msra.mxu0 %v1433
    %1906 = vmatprep.mubr.bf16.mxu0 %v561
    %1907 = vmatmul.mubr.bf16.gmra.mrb[0].mxu0 %v560
    %v1908 = vpop.f32.mrb[0].mxu0
    %v1909 = vadd.f32 %v1869, %v1908
    %v1910 = vpop.f32.mrb[0].mxu0
    %v1911 = vpop.f32.mrb[0].mxu0
    %v1912 = vpop.f32.mrb[0].mxu0
    %1913 = vdwg.mxu0
    %1914 = vmatprep.subr.bf16.mxu0 0
    %1915 = vmatpush1.bf16.msra.mxu0 %v1434
    %1916 = vmatprep.subr.bf16.mxu0 0
    %1917 = vmatpush1.bf16.msra.mxu0 %v1435
    %1918 = vmatprep.subr.bf16.mxu0 0
    %1919 = vmatpush1.bf16.msra.mxu0 %v1436
    %1920 = vmatprep.subr.bf16.mxu0 0
    %1921 = vmatpush1.bf16.msra.mxu0 %v1437
    %1922 = vmatprep.subr.bf16.mxu0 0
    %1923 = vmatpush1.bf16.msra.mxu0 %v1438
    %1924 = vmatprep.subr.bf16.mxu0 0
    %1925 = vmatpush1.bf16.msra.mxu0 %v1439
    %1926 = vmatprep.subr.bf16.mxu0 0
    %1927 = vmatpush1.bf16.msra.mxu0 %v1440
    %1928 = vmatprep.subr.bf16.mxu0 0
    %1929 = vmatpush1.bf16.msra.mxu0 %v1441
    %1930 = vmatprep.subr.bf16.mxu0 0
    %1931 = vmatpush1.bf16.msra.mxu0 %v1442
    %1932 = vmatprep.subr.bf16.mxu0 0
    %1933 = vmatpush1.bf16.msra.mxu0 %v1443
    %1934 = vmatprep.subr.bf16.mxu0 0
    %1935 = vmatpush1.bf16.msra.mxu0 %v1444
    %1936 = vmatprep.subr.bf16.mxu0 0
    %1937 = vmatpush1.bf16.msra.mxu0 %v1445
    %1938 = vmatprep.subr.bf16.mxu0 0
    %1939 = vmatpush1.bf16.msra.mxu0 %v1446
    %1940 = vmatprep.subr.bf16.mxu0 0
    %1941 = vmatpush1.bf16.msra.mxu0 %v1447
    %1942 = vmatprep.subr.bf16.mxu0 0
    %1943 = vmatpush1.bf16.msra.mxu0 %v1448
    %1944 = vmatprep.subr.bf16.mxu0 0
    %1945 = vmatpush1.bf16.msra.mxu0 %v1449
    %1946 = vmatprep.mubr.bf16.mxu0 %v563
    %1947 = vmatmul.mubr.bf16.gmra.mrb[0].mxu0 %v562
    %v1948 = vpop.f32.mrb[0].mxu0
    %v1949 = vadd.f32 %v1909, %v1948
    %v1950 = vpop.f32.mrb[0].mxu0
    %v1951 = vpop.f32.mrb[0].mxu0
    %v1952 = vpop.f32.mrb[0].mxu0
    %1953 = vdwg.mxu0
    %1954 = vmatprep.subr.bf16.mxu0 0
    %1955 = vmatpush1.bf16.msra.mxu0 %v1450
    %1956 = vmatprep.subr.bf16.mxu0 0
    %1957 = vmatpush1.bf16.msra.mxu0 %v1451
    %1958 = vmatprep.subr.bf16.mxu0 0
    %1959 = vmatpush1.bf16.msra.mxu0 %v1452
    %1960 = vmatprep.subr.bf16.mxu0 0
    %1961 = vmatpush1.bf16.msra.mxu0 %v1453
    %1962 = vmatprep.subr.bf16.mxu0 0
    %1963 = vmatpush1.bf16.msra.mxu0 %v1454
    %1964 = vmatprep.subr.bf16.mxu0 0
    %1965 = vmatpush1.bf16.msra.mxu0 %v1455
    %1966 = vmatprep.subr.bf16.mxu0 0
    %1967 = vmatpush1.bf16.msra.mxu0 %v1456
    %1968 = vmatprep.subr.bf16.mxu0 0
    %1969 = vmatpush1.bf16.msra.mxu0 %v1457
    %1970 = vmatprep.subr.bf16.mxu0 0
    %1971 = vmatpush1.bf16.msra.mxu0 %v1458
    %1972 = vmatprep.subr.bf16.mxu0 0
    %1973 = vmatpush1.bf16.msra.mxu0 %v1459
    %1974 = vmatprep.subr.bf16.mxu0 0
    %1975 = vmatpush1.bf16.msra.mxu0 %v1460
    %1976 = vmatprep.subr.bf16.mxu0 0
    %1977 = vmatpush1.bf16.msra.mxu0 %v1461
    %1978 = vmatprep.subr.bf16.mxu0 0
    %1979 = vmatpush1.bf16.msra.mxu0 %v1462
    %1980 = vmatprep.subr.bf16.mxu0 0
    %1981 = vmatpush1.bf16.msra.mxu0 %v1463
    %1982 = vmatprep.subr.bf16.mxu0 0
    %1983 = vmatpush1.bf16.msra.mxu0 %v1464
    %1984 = vmatprep.subr.bf16.mxu0 0
    %1985 = vmatpush1.bf16.msra.mxu0 %v1465
    %1986 = vmatprep.mubr.bf16.mxu0 %v565
    %1987 = vmatmul.mubr.bf16.gmra.mrb[0].mxu0 %v564
    %v1988 = vpop.f32.mrb[0].mxu0
    %v1989 = vadd.f32 %v1949, %v1988
    %v1990 = vpop.f32.mrb[0].mxu0
    %v1991 = vpop.f32.mrb[0].mxu0
    %v1992 = vpop.f32.mrb[0].mxu0
    %1993 = vdwg.mxu0
    %1994 = vmatprep.subr.bf16.mxu0 0
    %1995 = vmatpush1.bf16.msra.mxu0 %v1466
    %1996 = vmatprep.subr.bf16.mxu0 0
    %1997 = vmatpush1.bf16.msra.mxu0 %v1467
    %1998 = vmatprep.subr.bf16.mxu0 0
    %1999 = vmatpush1.bf16.msra.mxu0 %v1468
    %2000 = vmatprep.subr.bf16.mxu0 0
    %2001 = vmatpush1.bf16.msra.mxu0 %v1469
    %2002 = vmatprep.subr.bf16.mxu0 0
    %2003 = vmatpush1.bf16.msra.mxu0 %v1470
    %2004 = vmatprep.subr.bf16.mxu0 0
    %2005 = vmatpush1.bf16.msra.mxu0 %v1471
    %2006 = vmatprep.subr.bf16.mxu0 0
    %2007 = vmatpush1.bf16.msra.mxu0 %v1472
    %2008 = vmatprep.subr.bf16.mxu0 0
    %2009 = vmatpush1.bf16.msra.mxu0 %v1473
    %2010 = vmatprep.subr.bf16.mxu0 0
    %2011 = vmatpush1.bf16.msra.mxu0 %v1474
    %2012 = vmatprep.subr.bf16.mxu0 0
    %2013 = vmatpush1.bf16.msra.mxu0 %v1475
    %2014 = vmatprep.subr.bf16.mxu0 0
    %2015 = vmatpush1.bf16.msra.mxu0 %v1476
    %2016 = vmatprep.subr.bf16.mxu0 0
    %2017 = vmatpush1.bf16.msra.mxu0 %v1477
    %2018 = vmatprep.subr.bf16.mxu0 0
    %2019 = vmatpush1.bf16.msra.mxu0 %v1478
    %2020 = vmatprep.subr.bf16.mxu0 0
    %2021 = vmatpush1.bf16.msra.mxu0 %v1479
    %2022 = vmatprep.subr.bf16.mxu0 0
    %2023 = vmatpush1.bf16.msra.mxu0 %v1480
    %2024 = vmatprep.subr.bf16.mxu0 0
    %2025 = vmatpush1.bf16.msra.mxu0 %v1481
    %2026 = vmatprep.mubr.bf16.mxu0 %v567
    %2027 = vmatmul.mubr.bf16.gmra.mrb[0].mxu0 %v566
    %v2028 = vpop.f32.mrb[0].mxu0
    %v2029 = vadd.f32 %v1989, %v2028
    %v2030 = vpop.f32.mrb[0].mxu0
    %v2031 = vpop.f32.mrb[0].mxu0
    %v2032 = vpop.f32.mrb[0].mxu0
    %2033 = vdwg.mxu0
    %2034 = vmatprep.subr.bf16.mxu0 0
    %2035 = vmatpush1.bf16.msra.mxu0 %v1482
    %2036 = vmatprep.subr.bf16.mxu0 0
    %2037 = vmatpush1.bf16.msra.mxu0 %v1483
    %2038 = vmatprep.subr.bf16.mxu0 0
    %2039 = vmatpush1.bf16.msra.mxu0 %v1484
    %2040 = vmatprep.subr.bf16.mxu0 0
    %2041 = vmatpush1.bf16.msra.mxu0 %v1485
    %2042 = vmatprep.subr.bf16.mxu0 0
    %2043 = vmatpush1.bf16.msra.mxu0 %v1486
    %2044 = vmatprep.subr.bf16.mxu0 0
    %2045 = vmatpush1.bf16.msra.mxu0 %v1487
    %2046 = vmatprep.subr.bf16.mxu0 0
    %2047 = vmatpush1.bf16.msra.mxu0 %v1488
    %2048 = vmatprep.subr.bf16.mxu0 0
    %2049 = vmatpush1.bf16.msra.mxu0 %v1489
    %2050 = vmatprep.subr.bf16.mxu0 0
    %2051 = vmatpush1.bf16.msra.mxu0 %v1490
    %2052 = vmatprep.subr.bf16.mxu0 0
    %2053 = vmatpush1.bf16.msra.mxu0 %v1491
    %2054 = vmatprep.subr.bf16.mxu0 0
    %2055 = vmatpush1.bf16.msra.mxu0 %v1492
    %2056 = vmatprep.subr.bf16.mxu0 0
    %2057 = vmatpush1.bf16.msra.mxu0 %v1493
    %2058 = vmatprep.subr.bf16.mxu0 0
    %2059 = vmatpush1.bf16.msra.mxu0 %v1494
    %2060 = vmatprep.subr.bf16.mxu0 0
    %2061 = vmatpush1.bf16.msra.mxu0 %v1495
    %2062 = vmatprep.subr.bf16.mxu0 0
    %2063 = vmatpush1.bf16.msra.mxu0 %v1496
    %2064 = vmatprep.subr.bf16.mxu0 0
    %2065 = vmatpush1.bf16.msra.mxu0 %v1497
    %2066 = vmatprep.mubr.bf16.mxu0 %v569
    %2067 = vmatmul.mubr.bf16.gmra.mrb[0].mxu0 %v568
    %v2068 = vpop.f32.mrb[0].mxu0
    %v2069 = vadd.f32 %v2029, %v2068
    %v2070 = vpop.f32.mrb[0].mxu0
    %v2071 = vpop.f32.mrb[0].mxu0
    %v2072 = vpop.f32.mrb[0].mxu0
    %2073 = vdwg.mxu0
    %2074 = vmatprep.subr.bf16.mxu0 0
    %2075 = vmatpush1.bf16.msra.mxu0 %v1498
    %2076 = vmatprep.subr.bf16.mxu0 0
    %2077 = vmatpush1.bf16.msra.mxu0 %v1499
    %2078 = vmatprep.subr.bf16.mxu0 0
    %2079 = vmatpush1.bf16.msra.mxu0 %v1500
    %2080 = vmatprep.subr.bf16.mxu0 0
    %2081 = vmatpush1.bf16.msra.mxu0 %v1501
    %2082 = vmatprep.subr.bf16.mxu0 0
    %2083 = vmatpush1.bf16.msra.mxu0 %v1502
    %2084 = vmatprep.subr.bf16.mxu0 0
    %2085 = vmatpush1.bf16.msra.mxu0 %v1503
    %2086 = vmatprep.subr.bf16.mxu0 0
    %2087 = vmatpush1.bf16.msra.mxu0 %v1504
    %2088 = vmatprep.subr.bf16.mxu0 0
    %2089 = vmatpush1.bf16.msra.mxu0 %v1505
    %2090 = vmatprep.subr.bf16.mxu0 0
    %2091 = vmatpush1.bf16.msra.mxu0 %v1506
    %2092 = vmatprep.subr.bf16.mxu0 0
    %2093 = vmatpush1.bf16.msra.mxu0 %v1507
    %2094 = vmatprep.subr.bf16.mxu0 0
    %2095 = vmatpush1.bf16.msra.mxu0 %v1508
    %2096 = vmatprep.subr.bf16.mxu0 0
    %2097 = vmatpush1.bf16.msra.mxu0 %v1509
    %2098 = vmatprep.subr.bf16.mxu0 0
    %2099 = vmatpush1.bf16.msra.mxu0 %v1510
    %2100 = vmatprep.subr.bf16.mxu0 0
    %2101 = vmatpush1.bf16.msra.mxu0 %v1511
    %2102 = vmatprep.subr.bf16.mxu0 0
    %2103 = vmatpush1.bf16.msra.mxu0 %v1512
    %2104 = vmatprep.subr.bf16.mxu0 0
    %2105 = vmatpush1.bf16.msra.mxu0 %v1513
    %2106 = vmatprep.mubr.bf16.mxu0 %v571
    %2107 = vmatmul.mubr.bf16.gmra.mrb[0].mxu0 %v570
    %v2108 = vpop.f32.mrb[0].mxu0
    %v2109 = vadd.f32 %v2069, %v2108
    %v2110 = vpop.f32.mrb[0].mxu0
    %v2111 = vpop.f32.mrb[0].mxu0
    %v2112 = vpop.f32.mrb[0].mxu0
    %2113 = vdwg.mxu0
    %2114 = vmatprep.subr.bf16.mxu0 0
    %2115 = vmatpush1.bf16.msra.mxu0 %v1514
    %2116 = vmatprep.subr.bf16.mxu0 0
    %2117 = vmatpush1.bf16.msra.mxu0 %v1515
    %2118 = vmatprep.subr.bf16.mxu0 0
    %2119 = vmatpush1.bf16.msra.mxu0 %v1516
    %2120 = vmatprep.subr.bf16.mxu0 0
    %2121 = vmatpush1.bf16.msra.mxu0 %v1517
    %2122 = vmatprep.subr.bf16.mxu0 0
    %2123 = vmatpush1.bf16.msra.mxu0 %v1518
    %2124 = vmatprep.subr.bf16.mxu0 0
    %2125 = vmatpush1.bf16.msra.mxu0 %v1519
    %2126 = vmatprep.subr.bf16.mxu0 0
    %2127 = vmatpush1.bf16.msra.mxu0 %v1520
    %2128 = vmatprep.subr.bf16.mxu0 0
    %2129 = vmatpush1.bf16.msra.mxu0 %v1521
    %2130 = vmatprep.subr.bf16.mxu0 0
    %2131 = vmatpush1.bf16.msra.mxu0 %v1522
    %2132 = vmatprep.subr.bf16.mxu0 0
    %2133 = vmatpush1.bf16.msra.mxu0 %v1523
    %2134 = vmatprep.subr.bf16.mxu0 0
    %2135 = vmatpush1.bf16.msra.mxu0 %v1524
    %2136 = vmatprep.subr.bf16.mxu0 0
    %2137 = vmatpush1.bf16.msra.mxu0 %v1525
    %2138 = vmatprep.subr.bf16.mxu0 0
    %2139 = vmatpush1.bf16.msra.mxu0 %v1526
    %2140 = vmatprep.subr.bf16.mxu0 0
    %2141 = vmatpush1.bf16.msra.mxu0 %v1527
    %2142 = vmatprep.subr.bf16.mxu0 0
    %2143 = vmatpush1.bf16.msra.mxu0 %v1528
    %2144 = vmatprep.subr.bf16.mxu0 0
    %2145 = vmatpush1.bf16.msra.mxu0 %v1529
    %2146 = vmatprep.mubr.bf16.mxu0 %v573
    %2147 = vmatmul.mubr.bf16.gmra.mrb[0].mxu0 %v572
    %v2148 = vpop.f32.mrb[0].mxu0
    %v2149 = vadd.f32 %v2109, %v2148
    %v2150 = vpop.f32.mrb[0].mxu0
    %v2151 = vpop.f32.mrb[0].mxu0
    %v2152 = vpop.f32.mrb[0].mxu0
    %2153 = vdwg.mxu0
    %2154 = vmatprep.subr.bf16.mxu0 0
    %2155 = vmatpush1.bf16.msra.mxu0 %v1530
    %2156 = vmatprep.subr.bf16.mxu0 0
    %2157 = vmatpush1.bf16.msra.mxu0 %v1531
    %2158 = vmatprep.subr.bf16.mxu0 0
    %2159 = vmatpush1.bf16.msra.mxu0 %v1532
    %2160 = vmatprep.subr.bf16.mxu0 0
    %2161 = vmatpush1.bf16.msra.mxu0 %v1533
    %2162 = vmatprep.subr.bf16.mxu0 0
    %2163 = vmatpush1.bf16.msra.mxu0 %v1534
    %2164 = vmatprep.subr.bf16.mxu0 0
    %2165 = vmatpush1.bf16.msra.mxu0 %v1535
    %2166 = vmatprep.subr.bf16.mxu0 0
    %2167 = vmatpush1.bf16.msra.mxu0 %v1536
    %2168 = vmatprep.subr.bf16.mxu0 0
    %2169 = vmatpush1.bf16.msra.mxu0 %v1537
    %2170 = vmatprep.subr.bf16.mxu0 0
    %2171 = vmatpush1.bf16.msra.mxu0 %v1538
    %2172 = vmatprep.subr.bf16.mxu0 0
    %2173 = vmatpush1.bf16.msra.mxu0 %v1539
    %2174 = vmatprep.subr.bf16.mxu0 0
    %2175 = vmatpush1.bf16.msra.mxu0 %v1540
    %2176 = vmatprep.subr.bf16.mxu0 0
    %2177 = vmatpush1.bf16.msra.mxu0 %v1541
    %2178 = vmatprep.subr.bf16.mxu0 0
    %2179 = vmatpush1.bf16.msra.mxu0 %v1542
    %2180 = vmatprep.subr.bf16.mxu0 0
    %2181 = vmatpush1.bf16.msra.mxu0 %v1543
    %2182 = vmatprep.subr.bf16.mxu0 0
    %2183 = vmatpush1.bf16.msra.mxu0 %v1544
    %2184 = vmatprep.subr.bf16.mxu0 0
    %2185 = vmatpush1.bf16.msra.mxu0 %v1545
    %2186 = vmatprep.mubr.bf16.mxu0 %v575
    %2187 = vmatmul.mubr.bf16.gmra.mrb[0].mxu0 %v574
    %v2188 = vpop.f32.mrb[0].mxu0
    %v2189 = vadd.f32 %v2149, %v2188
    %v2190 = vpop.f32.mrb[0].mxu0
    %v2191 = vpop.f32.mrb[0].mxu0
    %v2192 = vpop.f32.mrb[0].mxu0
    %2193 = vdwg.mxu0
    %2194 = vmatprep.subr.bf16.mxu0 0
    %2195 = vmatpush1.bf16.msra.mxu0 %v1546
    %2196 = vmatprep.subr.bf16.mxu0 0
    %2197 = vmatpush1.bf16.msra.mxu0 %v1547
    %2198 = vmatprep.subr.bf16.mxu0 0
    %2199 = vmatpush1.bf16.msra.mxu0 %v1548
    %2200 = vmatprep.subr.bf16.mxu0 0
    %2201 = vmatpush1.bf16.msra.mxu0 %v1549
    %2202 = vmatprep.subr.bf16.mxu0 0
    %2203 = vmatpush1.bf16.msra.mxu0 %v1550
    %2204 = vmatprep.subr.bf16.mxu0 0
    %2205 = vmatpush1.bf16.msra.mxu0 %v1551
    %2206 = vmatprep.subr.bf16.mxu0 0
    %2207 = vmatpush1.bf16.msra.mxu0 %v1552
    %2208 = vmatprep.subr.bf16.mxu0 0
    %2209 = vmatpush1.bf16.msra.mxu0 %v1553
    %2210 = vmatprep.subr.bf16.mxu0 0
    %2211 = vmatpush1.bf16.msra.mxu0 %v1554
    %2212 = vmatprep.subr.bf16.mxu0 0
    %2213 = vmatpush1.bf16.msra.mxu0 %v1555
    %2214 = vmatprep.subr.bf16.mxu0 0
    %2215 = vmatpush1.bf16.msra.mxu0 %v1556
    %2216 = vmatprep.subr.bf16.mxu0 0
    %2217 = vmatpush1.bf16.msra.mxu0 %v1557
    %2218 = vmatprep.subr.bf16.mxu0 0
    %2219 = vmatpush1.bf16.msra.mxu0 %v1558
    %2220 = vmatprep.subr.bf16.mxu0 0
    %2221 = vmatpush1.bf16.msra.mxu0 %v1559
    %2222 = vmatprep.subr.bf16.mxu0 0
    %2223 = vmatpush1.bf16.msra.mxu0 %v1560
    %2224 = vmatprep.subr.bf16.mxu0 0
    %2225 = vmatpush1.bf16.msra.mxu0 %v1561
    %2226 = vmatprep.mubr.bf16.mxu0 %v577
    %2227 = vmatmul.mubr.bf16.gmra.mrb[0].mxu0 %v576
    %v2228 = vpop.f32.mrb[0].mxu0
    %v2229 = vadd.f32 %v2189, %v2228
    %v2230 = vpop.f32.mrb[0].mxu0
    %v2231 = vpop.f32.mrb[0].mxu0
    %v2232 = vpop.f32.mrb[0].mxu0
    %2233 = vdwg.mxu0
    %v2234 = vmax.f32 %v2229, 0.0
    %v2235 = vpack.c.bf16 %v2234, %v2234
    %v2236 = vld [vmem:[#allocation8] sm:$0xf]
    %v2237 = vld [vmem:[#allocation8 + $0x4] sm:$0xf]
    %v2238 = vld [vmem:[#allocation8 + $0x8] sm:$0xf]
    %v2239 = vld [vmem:[#allocation8 + $0xc] sm:$0xf]
    %v2240 = vld [vmem:[#allocation8 + $0x10] sm:$0xf]
    %v2241 = vld [vmem:[#allocation8 + $0x14] sm:$0xf]
    %v2242 = vld [vmem:[#allocation8 + $0x18] sm:$0xf]
    %v2243 = vld [vmem:[#allocation8 + $0x1c] sm:$0xf]
    %v2244 = vld [vmem:[#allocation8 + $0x20] sm:$0xf]
    %v2245 = vld [vmem:[#allocation8 + $0x24] sm:$0xf]
    %v2246 = vld [vmem:[#allocation8 + $0x28] sm:$0xf]
    %v2247 = vld [vmem:[#allocation8 + $0x2c] sm:$0xf]
    %v2248 = vld [vmem:[#allocation8 + $0x30] sm:$0xf]
    %v2249 = vld [vmem:[#allocation8 + $0x34] sm:$0xf]
    %v2250 = vld [vmem:[#allocation8 + $0x38] sm:$0xf]
    %v2251 = vld [vmem:[#allocation8 + $0x3c] sm:$0xf]
    %v2252 = vld [vmem:[#allocation10] sm:$0x1]
    %v2254 = vlaneseq
    %v2255 = vshrl.u32 %v2254, 7
    %v2256 = vsub.s32 0, %v2255
    %v2257 = vrot.slane %v2252, %v2256
    %v2275 = vunpack.c.l.b16 %v2236
    %v2276 = vunpack.c.l.b16 %v2237
    %v2277 = vunpack.c.l.b16 %v2238
    %v2278 = vunpack.c.l.b16 %v2239
    %v2279 = vunpack.c.l.b16 %v2240
    %v2280 = vunpack.c.l.b16 %v2241
    %v2281 = vunpack.c.l.b16 %v2242
    %v2282 = vunpack.c.l.b16 %v2243
    %v2283 = vunpack.c.l.b16 %v2244
    %v2284 = vunpack.c.l.b16 %v2245
    %v2285 = vunpack.c.l.b16 %v2246
    %v2286 = vunpack.c.l.b16 %v2247
    %v2287 = vunpack.c.l.b16 %v2248
    %v2288 = vunpack.c.l.b16 %v2249
    %v2289 = vunpack.c.l.b16 %v2250
    %v2290 = vunpack.c.l.b16 %v2251
    %v2291 = vpack.c.b16 %v2276, %v2275
    %v2292 = vpack.c.b16 %v2278, %v2277
    %v2293 = vpack.c.b16 %v2280, %v2279
    %v2294 = vpack.c.b16 %v2282, %v2281
    %v2295 = vpack.c.b16 %v2284, %v2283
    %v2296 = vpack.c.b16 %v2286, %v2285
    %v2297 = vpack.c.b16 %v2288, %v2287
    %v2298 = vpack.c.b16 %v2290, %v2289
    %2307 = vmatprep.subr.bf16.mxu0 0
    %2308 = vmatpush1.bf16.msra.mxu0 %v2291
    %2309 = vmatprep.subr.bf16.mxu0 0
    %2310 = vmatpush1.bf16.msra.mxu0 %v2292
    %2311 = vmatprep.subr.bf16.mxu0 0
    %2312 = vmatpush1.bf16.msra.mxu0 %v2293
    %2313 = vmatprep.subr.bf16.mxu0 0
    %2314 = vmatpush1.bf16.msra.mxu0 %v2294
    %2315 = vmatprep.subr.bf16.mxu0 0
    %2316 = vmatpush1.bf16.msra.mxu0 %v2295
    %2317 = vmatprep.subr.bf16.mxu0 0
    %2318 = vmatpush1.bf16.msra.mxu0 %v2296
    %2319 = vmatprep.subr.bf16.mxu0 0
    %2320 = vmatpush1.bf16.msra.mxu0 %v2297
    %2321 = vmatprep.subr.bf16.mxu0 0
    %2322 = vmatpush1.bf16.msra.mxu0 %v2298
    %2323 = vmatprep.subr.bf16.mxu0 0
    %2324 = vmatpush1.bf16.msra.mxu0 0
    %2325 = vmatprep.subr.bf16.mxu0 0
    %2326 = vmatpush1.bf16.msra.mxu0 0
    %2327 = vmatprep.subr.bf16.mxu0 0
    %2328 = vmatpush1.bf16.msra.mxu0 0
    %2329 = vmatprep.subr.bf16.mxu0 0
    %2330 = vmatpush1.bf16.msra.mxu0 0
    %2331 = vmatprep.subr.bf16.mxu0 0
    %2332 = vmatpush1.bf16.msra.mxu0 0
    %2333 = vmatprep.subr.bf16.mxu0 0
    %2334 = vmatpush1.bf16.msra.mxu0 0
    %2335 = vmatprep.subr.bf16.mxu0 0
    %2336 = vmatpush1.bf16.msra.mxu0 0
    %2337 = vmatprep.subr.bf16.mxu0 0
    %2338 = vmatpush1.bf16.msra.mxu0 0
    %2339 = vmatprep.mubr.bf16.mxu0 0
    %2340 = vmatmul.mubr.bf16.gmra.mrb[0].mxu0 %v2235
    %v2341 = vpop.f32.mrb[0].mxu0
    %v2342 = vadd.f32 %v2257, %v2341
    %v2343 = vpop.f32.mrb[0].mxu0
    %v2344 = vpop.f32.mrb[0].mxu0
    %v2345 = vpop.f32.mrb[0].mxu0
    %2346 = vdwg.mxu0
    %v2347 = vmax.f32 %v2342, 0.0
    %v2348 = vpack.c.bf16 %v2347, %v2347
    %v2349 = vld [vmem:[#allocation11] sm:$0xf]
    %v2350 = vld [vmem:[#allocation11 + $0x4] sm:$0xf]
    %v2351 = vld [vmem:[#allocation11 + $0x8] sm:$0xf]
    %v2352 = vld [vmem:[#allocation11 + $0xc] sm:$0xf]
    %v2353 = vld [vmem:[#allocation11 + $0x10] sm:$0xf]
    %v2354 = vld [vmem:[#allocation11 + $0x14] sm:$0xf]
    %v2355 = vld [vmem:[#allocation11 + $0x18] sm:$0xf]
    %v2356 = vld [vmem:[#allocation11 + $0x1c] sm:$0xf]
    %v2357 = vld [vmem:[#allocation11 + $0x20] sm:$0xf]
    %v2358 = vld [vmem:[#allocation11 + $0x24] sm:$0xf]
    %v2359 = vld [vmem:[#allocation11 + $0x28] sm:$0xf]
    %v2360 = vld [vmem:[#allocation11 + $0x2c] sm:$0xf]
    %v2361 = vld [vmem:[#allocation11 + $0x30] sm:$0xf]
    %v2362 = vld [vmem:[#allocation11 + $0x34] sm:$0xf]
    %v2363 = vld [vmem:[#allocation11 + $0x38] sm:$0xf]
    %v2364 = vld [vmem:[#allocation11 + $0x3c] sm:$0xf]
    %v2365 = vld [vmem:[#allocation13] sm:$0x1]
    %v2367 = vlaneseq
    %v2368 = vshrl.u32 %v2367, 7
    %v2369 = vsub.s32 0, %v2368
    %v2370 = vrot.slane %v2365, %v2369
    %v2388 = vunpack.c.l.b16 %v2349
    %v2389 = vunpack.c.l.b16 %v2350
    %v2390 = vunpack.c.l.b16 %v2351
    %v2391 = vunpack.c.l.b16 %v2352
    %v2392 = vunpack.c.l.b16 %v2353
    %v2393 = vunpack.c.l.b16 %v2354
    %v2394 = vunpack.c.l.b16 %v2355
    %v2395 = vunpack.c.l.b16 %v2356
    %v2396 = vunpack.c.l.b16 %v2357
    %v2397 = vunpack.c.l.b16 %v2358
    %v2398 = vunpack.c.l.b16 %v2359
    %v2399 = vunpack.c.l.b16 %v2360
    %v2400 = vunpack.c.l.b16 %v2361
    %v2401 = vunpack.c.l.b16 %v2362
    %v2402 = vunpack.c.l.b16 %v2363
    %v2403 = vunpack.c.l.b16 %v2364
    %v2404 = vpack.c.b16 %v2389, %v2388
    %v2405 = vpack.c.b16 %v2391, %v2390
    %v2406 = vpack.c.b16 %v2393, %v2392
    %v2407 = vpack.c.b16 %v2395, %v2394
    %v2408 = vpack.c.b16 %v2397, %v2396
    %v2409 = vpack.c.b16 %v2399, %v2398
    %v2410 = vpack.c.b16 %v2401, %v2400
    %v2411 = vpack.c.b16 %v2403, %v2402
    %2420 = vmatprep.subr.bf16.mxu0 0
    %2421 = vmatpush1.bf16.msra.mxu0 %v2404
    %2422 = vmatprep.subr.bf16.mxu0 0
    %2423 = vmatpush1.bf16.msra.mxu0 %v2405
    %2424 = vmatprep.subr.bf16.mxu0 0
    %2425 = vmatpush1.bf16.msra.mxu0 %v2406
    %2426 = vmatprep.subr.bf16.mxu0 0
    %2427 = vmatpush1.bf16.msra.mxu0 %v2407
    %2428 = vmatprep.subr.bf16.mxu0 0
    %2429 = vmatpush1.bf16.msra.mxu0 %v2408
    %2430 = vmatprep.subr.bf16.mxu0 0
    %2431 = vmatpush1.bf16.msra.mxu0 %v2409
    %2432 = vmatprep.subr.bf16.mxu0 0
    %2433 = vmatpush1.bf16.msra.mxu0 %v2410
    %2434 = vmatprep.subr.bf16.mxu0 0
    %2435 = vmatpush1.bf16.msra.mxu0 %v2411
    %2436 = vmatprep.subr.bf16.mxu0 0
    %2437 = vmatpush1.bf16.msra.mxu0 0
    %2438 = vmatprep.subr.bf16.mxu0 0
    %2439 = vmatpush1.bf16.msra.mxu0 0
    %2440 = vmatprep.subr.bf16.mxu0 0
    %2441 = vmatpush1.bf16.msra.mxu0 0
    %2442 = vmatprep.subr.bf16.mxu0 0
    %2443 = vmatpush1.bf16.msra.mxu0 0
    %2444 = vmatprep.subr.bf16.mxu0 0
    %2445 = vmatpush1.bf16.msra.mxu0 0
    %2446 = vmatprep.subr.bf16.mxu0 0
    %2447 = vmatpush1.bf16.msra.mxu0 0
    %2448 = vmatprep.subr.bf16.mxu0 0
    %2449 = vmatpush1.bf16.msra.mxu0 0
    %2450 = vmatprep.subr.bf16.mxu0 0
    %2451 = vmatpush1.bf16.msra.mxu0 0
    %2452 = vmatprep.mubr.bf16.mxu0 0
    %2453 = vmatmul.mubr.bf16.gmra.mrb[0].mxu0 %v2348
    %v2454 = vpop.f32.mrb[0].mxu0
    %v2455 = vadd.f32 %v2370, %v2454
    %v2456 = vpop.f32.mrb[0].mxu0
    %v2457 = vpop.f32.mrb[0].mxu0
    %v2458 = vpop.f32.mrb[0].mxu0
    %2459 = vdwg.mxu0
    %2460 = vst [vmem:[#allocation14] sm:$0xff] %v2455
    // Predicated region
    $region58: #{tpu_custom_call.1} parent=1 // pred_check
      _
    $region59: #{tpu_custom_call.1} parent=1 // pred_check_branch
      %2462 = sbr.rel (0) target = $region61
    $region60: #{tpu_custom_call.1} parent=1 // pred_region
      %s2464 = ssub.s32 128, 128
      %2465 = vsyncadd [#allocation4], %s2464
      %s2467 = sshll.u32 [#allocation14], 4
      %s2468 = int_to_ptr.vmem [resolvable:$true] %s2467
      %2470 = dma.vmem_to_hbm [thread:$0]  %s2468, 128, %s7, [#allocation4]
    $region61: #{tpu_custom_call.1} parent=1 // pred_fallthru
      _
    // Predicated region
    $region62: #{tpu_custom_call.1} parent=1 // pred_check
      _
    $region63: #{tpu_custom_call.1} parent=1 // pred_check_branch
      %2472 = sbr.rel (0) target = $region65
    $region64: #{tpu_custom_call.1} parent=1 // pred_region
      %2473 = dma.done [#allocation4], 128
    $region65: #{tpu_custom_call.1} parent=1 // pred_fallthru
      _
    %2474 = vsyncpa [#allocation3], 1
    %2475 = vsyncpa [#allocation6], 1
    %2476 = vsyncpa [#allocation9], 1
    %2477 = vsyncpa [#allocation12], 1
    %2478 = vsyncpa [#allocation4], 1

</llo_original>
